<compile_context>
chip_gen: v6e
topology: v6e:2x2x1
jax: 0.10.0
libtpu: 0.0.40
codegen_flags: <defaults>
</compile_context>

<pallas_src>
import functools

import jax
import jax.numpy as jnp
from jax import lax
from jax.experimental import pallas as pl
from jax.experimental.pallas import tpu as pltpu

EPS = 1e-5
LANE = 128
COMPUTE_DTYPE = jnp.bfloat16   # MXU operand dtype (f32 accumulation). Use jnp.float32 for
                               # bit-closer parity with an f32 reference (slower on v6e/v7x).
VMEM_LIMIT_BYTES = 32 * 1024 * 1024


def _round_up(x, m):
    return (x + m - 1) // m * m


def _pick_row_tile(H, W, cin_p, cout_p, budget_bytes=8 * 1024 * 1024):
    """Largest row tile whose double-buffered working set fits a conservative VMEM budget
    (budget sized so it is safe on v7x's 64 MiB physical / 32 MiB scoped VMEM)."""
    isz = jnp.dtype(COMPUTE_DTYPE).itemsize
    for th in (256, 128, 64, 32, 16, 8):
        if H % th:
            continue
        x_tile = (th + 2) * (W + 2) * cin_p * isz           # input halo tile
        y_tile = th * W * cout_p * 4 + 8 * cout_p * 4       # f32 conv out + stats
        im2col = th * W * 9 * cin_p * isz + th * W * cout_p * 4
        w_bytes = 9 * cin_p * cout_p * isz
        if 2 * (x_tile + y_tile) + im2col + 2 * w_bytes <= budget_bytes:
            return th
    return 8 if H % 8 == 0 else H


# --------------------------------------------------------------------------------------
# Phase 1 kernel: 3x3 conv on one (batch, row-tile) block via im2col + single MXU matmul,
# plus per-tile BN partial sums (sum and sum-of-squares per output channel).
# --------------------------------------------------------------------------------------
def _conv_stats_kernel(x_ref, w_ref, y_ref, stats_ref, *, th, W, cin_p, cout_p):
    x = x_ref[0, 0]                                    # (th+2, W+2, Cin_p), compute dtype
    cols = []
    for dy in range(3):
        for dx in range(3):
            cols.append(x[dy:dy + th, dx:dx + W, :])   # (th, W, Cin_p)
    # im2col patch matrix: (th*W, 9*Cin_p); one lane-dense matmul drives the MXU.
    patches = jnp.concatenate(cols, axis=-1).reshape(th * W, 9 * cin_p)
    acc = jnp.dot(patches, w_ref[...], preferred_element_type=jnp.float32)  # (th*W, Cout_p)

    y_ref[0, 0] = acc                                  # pre-BN conv output tile (f32)

    s1 = jnp.sum(acc, axis=0, keepdims=True)           # (1, Cout_p)
    s2 = jnp.sum(acc * acc, axis=0, keepdims=True)     # (1, Cout_p)
    stats_ref[0, 0] = jnp.concatenate(
        [s1, s2, jnp.zeros((6, cout_p), jnp.float32)], axis=0)   # (8, Cout_p) sublane-aligned


# --------------------------------------------------------------------------------------
# Phase 2 kernel: elementwise BN apply (precomputed per-channel scale/shift) + ReLU.
# --------------------------------------------------------------------------------------
def _bn_relu_kernel(y_ref, scale_ref, shift_ref, o_ref):
    y = y_ref[0, 0]                                    # (th*W, Cout_p) f32
    o_ref[0, 0] = jnp.maximum(y * scale_ref[...] + shift_ref[...], 0.0)


def _conv_bn_relu_stage(x_nhwc, w_oihw, gamma, beta, row_tile=None):
    """One Conv2d(3x3, pad=1, bias folded away) + BatchNorm2d(train) + ReLU.

    x_nhwc may already carry zero channel-padding from the previous stage; returns the
    activation with channels padded to a multiple of 128 (padded channels are exactly 0).
    """
    N, H, W, Cx = x_nhwc.shape
    Cout, Cin = w_oihw.shape[0], w_oihw.shape[1]
    assert Cx in (Cin, _round_up(Cin, LANE)), (Cx, Cin)
    cin_p = _round_up(Cx, LANE)
    cout_p = _round_up(Cout, LANE)

    th = _pick_row_tile(H, W, cin_p, cout_p) if row_tile is None else row_tile
    assert H % th == 0, f"row_tile {th} must divide H={H}"
    T = H // th

    # ---- XLA-side marshaling (one fused pass): zero-pad spatial halo + channel lanes and
    # re-block into overlap-free halo row-tiles of shape (th+2, W+2, Cin_p).
    xp = jnp.pad(x_nhwc, ((0, 0), (1, 1), (1, 1), (0, cin_p - Cx)))
    x_tiles = jnp.stack([xp[:, i * th:i * th + th + 2] for i in range(T)], axis=1)
    x_tiles = x_tiles.astype(COMPUTE_DTYPE)            # (N, T, th+2, W+2, Cin_p)

    # Conv weight: OIHW -> (9*Cin_p, Cout_p), tap-major (dy, dx, ci) to match the im2col order.
    w = jnp.transpose(w_oihw, (2, 3, 1, 0))            # (3, 3, Cin, Cout)
    w = jnp.pad(w, ((0, 0), (0, 0), (0, cin_p - Cin), (0, cout_p - Cout)))
    w = w.reshape(9 * cin_p, cout_p).astype(COMPUTE_DTYPE)

    conv_kernel = functools.partial(_conv_stats_kernel, th=th, W=W, cin_p=cin_p, cout_p=cout_p)
    y_conv, stats = pl.pallas_call(
        conv_kernel,
        grid=(N, T),
        in_specs=[
            pl.BlockSpec((1, 1, th + 2, W + 2, cin_p), lambda n, i: (n, i, 0, 0, 0)),
            pl.BlockSpec((9 * cin_p, cout_p), lambda n, i: (0, 0)),   # weights stay resident
        ],
        out_specs=[
            pl.BlockSpec((1, 1, th * W, cout_p), lambda n, i: (n, i, 0, 0)),
            pl.BlockSpec((1, 1, 8, cout_p), lambda n, i: (n, i, 0, 0)),
        ],
        out_shape=[
            jax.ShapeDtypeStruct((N, T, th * W, cout_p), jnp.float32),
            jax.ShapeDtypeStruct((N, T, 8, cout_p), jnp.float32),
        ],
        compiler_params=pltpu.CompilerParams(
            dimension_semantics=("parallel", "parallel"),
            vmem_limit_bytes=VMEM_LIMIT_BYTES),
    )(x_tiles, w)

    # ---- Tiny global reduction over per-tile partials -> train-mode batch statistics.
    cnt = jnp.float32(N * H * W)
    s1 = jnp.sum(stats[:, :, 0, :], axis=(0, 1))       # (Cout_p,)
    s2 = jnp.sum(stats[:, :, 1, :], axis=(0, 1))
    mean = s1 / cnt
    var = s2 / cnt - mean * mean                       # biased variance (PyTorch train-mode)
    gamma_p = jnp.pad(gamma.astype(jnp.float32), (0, cout_p - Cout))
    beta_p = jnp.pad(beta.astype(jnp.float32), (0, cout_p - Cout))
    scale = (gamma_p * lax.rsqrt(var + EPS)).reshape(1, cout_p)
    shift = (beta_p - mean.reshape(1, cout_p) * scale)

    act = pl.pallas_call(
        _bn_relu_kernel,
        grid=(N, T),
        in_specs=[
            pl.BlockSpec((1, 1, th * W, cout_p), lambda n, i: (n, i, 0, 0)),
            pl.BlockSpec((1, cout_p), lambda n, i: (0, 0)),
            pl.BlockSpec((1, cout_p), lambda n, i: (0, 0)),
        ],
        out_specs=pl.BlockSpec((1, 1, th * W, cout_p), lambda n, i: (n, i, 0, 0)),
        out_shape=jax.ShapeDtypeStruct((N, T, th * W, cout_p), jnp.float32),
        compiler_params=pltpu.CompilerParams(
            dimension_semantics=("parallel", "parallel"),
            vmem_limit_bytes=VMEM_LIMIT_BYTES),
    )(y_conv, scale, shift)

    # (N, T, th*W, Cout_p) -> (N, H, W, Cout_p): contiguous, layout-free reshape.
    return act.reshape(N, H, W, cout_p)


def double_conv(x_nchw, params, row_tile=None):
    """DoubleConv forward. x_nchw: (N, Cin, H, W) -> (N, Cout, H, W).

    params = ((w1, b1, gamma1, beta1), (w2, b2, gamma2, beta2)).
    Conv biases b1/b2 are accepted for interface parity with nn.Conv2d but are not used:
    training-mode BatchNorm subtracts the per-channel mean, cancelling the bias exactly.
    """
    (w1, _b1, g1, be1), (w2, _b2, g2, be2) = params
    x = jnp.transpose(x_nchw, (0, 2, 3, 1))            # NCHW -> NHWC, once per module
    y = _conv_bn_relu_stage(x, w1, g1, be1, row_tile=row_tile)   # padded channels stay 0
    y = _conv_bn_relu_stage(y, w2, g2, be2, row_tile=row_tile)
    y = y[..., :w2.shape[0]]                           # drop channel padding
    return jnp.transpose(y, (0, 3, 1, 2))              # NHWC -> NCHW


# ---------------- pure-JAX f32 reference (for the correctness check) ----------------
def _ref_conv_bn_relu(x_nchw, w, b, g, be):
    y = lax.conv_general_dilated(
        x_nchw.astype(jnp.float32), w.astype(jnp.float32),
        window_strides=(1, 1), padding=((1, 1), (1, 1)),
        dimension_numbers=("NCHW", "OIHW", "NCHW"))
    y = y + b.reshape(1, -1, 1, 1)
    mean = jnp.mean(y, axis=(0, 2, 3), keepdims=True)
    var = jnp.mean((y - mean) ** 2, axis=(0, 2, 3), keepdims=True)
    y = (y - mean) / jnp.sqrt(var + EPS)
    y = y * g.reshape(1, -1, 1, 1) + be.reshape(1, -1, 1, 1)
    return jnp.maximum(y, 0.0)


def _ref_double_conv(x_nchw, params):
    (w1, b1, g1, be1), (w2, b2, g2, be2) = params
    y = _ref_conv_bn_relu(x_nchw, w1, b1, g1, be1)
    return _ref_conv_bn_relu(y, w2, b2, g2, be2)


if __name__ == "__main__":
    # Small shapes: batch=2, in_channels=4, spatial=16x16, mid=out=8
    N, Cin, H, W = 2, 4, 16, 16
    Cmid, Cout = 8, 8

    key = jax.random.PRNGKey(0)
    kx, kw1, kb1, kg1, kbe1, kw2, kb2, kg2, kbe2 = jax.random.split(key, 9)

    x = jax.random.normal(kx, (N, Cin, H, W), jnp.float32)

    w1 = jax.random.normal(kw1, (Cmid, Cin, 3, 3), jnp.float32) * 0.1
    b1 = jax.random.normal(kb1, (Cmid,), jnp.float32) * 0.1
    g1 = 1.0 + 0.1 * jax.random.normal(kg1, (Cmid,), jnp.float32)
    be1 = 0.1 * jax.random.normal(kbe1, (Cmid,), jnp.float32)

    w2 = jax.random.normal(kw2, (Cout, Cmid, 3, 3), jnp.float32) * 0.1
    b2 = jax.random.normal(kb2, (Cout,), jnp.float32) * 0.1
    g2 = 1.0 + 0.1 * jax.random.normal(kg2, (Cout,), jnp.float32)
    be2 = 0.1 * jax.random.normal(kbe2, (Cout,), jnp.float32)

    params = ((w1, b1, g1, be1), (w2, b2, g2, be2))

    # row_tile=8 -> T=2 row tiles, so the multi-tile grid path (i > 0) is exercised.
    fwd = jax.jit(functools.partial(double_conv, row_tile=8))
    out = jax.block_until_ready(fwd(x, params))

    ref = _ref_double_conv(x, params)
    assert out.shape == (N, Cout, H, W), out.shape
    # bf16 MXU operands with f32 accumulation -> bf16-level agreement vs the f32 reference.
    assert jnp.allclose(out, ref, rtol=3e-2, atol=3e-2), float(jnp.max(jnp.abs(out - ref)))

    print("KERNEL_OK")
</pallas_src>

<mosaic_0001>
module attributes {stable_mosaic.version = 11 : i64} {
  func.func @_conv_stats_kernel(%arg0: i32, %arg1: i32, %arg2: memref<1x1x10x18x128xbf16, #tpu.memory_space<vmem>>, %arg3: memref<1152x128xbf16, #tpu.memory_space<vmem>>, %arg4: memref<1x1x128x128xf32, #tpu.memory_space<vmem>>, %arg5: memref<1x1x8x128xf32, #tpu.memory_space<vmem>>) attributes {dimension_semantics = [#tpu.dimension_semantics<parallel>, #tpu.dimension_semantics<parallel>], iteration_bounds = array<i64: 2, 2>, scalar_prefetch = 0 : i64, scratch_operands = 0 : i64, tpu.core_type = #tpu.core_type<tc>, window_params = [{transform_indices = @transform_0, window_bounds = array<i64: 1, 1, 10, 18, 128>}, {pipeline_mode = #tpu.pipeline_mode<synchronous>, transform_indices = @transform_1, window_bounds = array<i64: 1152, 128>}, {transform_indices = @transform_2, window_bounds = array<i64: 1, 1, 128, 128>}, {transform_indices = @transform_3, window_bounds = array<i64: 1, 1, 8, 128>}]} {
    %c0 = arith.constant 0 : index
    %c0_0 = arith.constant 0 : index
    %c0_1 = arith.constant 0 : index
    %c0_2 = arith.constant 0 : index
    %c0_3 = arith.constant 0 : index
    %0 = vector.load %arg2[%c0, %c0_0, %c0_1, %c0_2, %c0_3] : memref<1x1x10x18x128xbf16, #tpu.memory_space<vmem>>, vector<1x1x10x18x128xbf16>
    %1 = vector.shape_cast %0 : vector<1x1x10x18x128xbf16> to vector<10x18x128xbf16>
    %2 = vector.extract_strided_slice %1 {offsets = [0, 0, 0], sizes = [8, 16, 128], strides = [1, 1, 1]} : vector<10x18x128xbf16> to vector<8x16x128xbf16>
    %3 = vector.extract_strided_slice %1 {offsets = [0, 1, 0], sizes = [8, 16, 128], strides = [1, 1, 1]} : vector<10x18x128xbf16> to vector<8x16x128xbf16>
    %4 = vector.extract_strided_slice %1 {offsets = [0, 2, 0], sizes = [8, 16, 128], strides = [1, 1, 1]} : vector<10x18x128xbf16> to vector<8x16x128xbf16>
    %5 = vector.extract_strided_slice %1 {offsets = [1, 0, 0], sizes = [8, 16, 128], strides = [1, 1, 1]} : vector<10x18x128xbf16> to vector<8x16x128xbf16>
    %6 = vector.extract_strided_slice %1 {offsets = [1, 1, 0], sizes = [8, 16, 128], strides = [1, 1, 1]} : vector<10x18x128xbf16> to vector<8x16x128xbf16>
    %7 = vector.extract_strided_slice %1 {offsets = [1, 2, 0], sizes = [8, 16, 128], strides = [1, 1, 1]} : vector<10x18x128xbf16> to vector<8x16x128xbf16>
    %8 = vector.extract_strided_slice %1 {offsets = [2, 0, 0], sizes = [8, 16, 128], strides = [1, 1, 1]} : vector<10x18x128xbf16> to vector<8x16x128xbf16>
    %9 = vector.extract_strided_slice %1 {offsets = [2, 1, 0], sizes = [8, 16, 128], strides = [1, 1, 1]} : vector<10x18x128xbf16> to vector<8x16x128xbf16>
    %10 = vector.extract_strided_slice %1 {offsets = [2, 2, 0], sizes = [8, 16, 128], strides = [1, 1, 1]} : vector<10x18x128xbf16> to vector<8x16x128xbf16>
    %11 = tpu.concatenate %2, %3, %4, %5, %6, %7, %8, %9, %10 in 2 : vector<8x16x128xbf16>, vector<8x16x128xbf16>, vector<8x16x128xbf16>, vector<8x16x128xbf16>, vector<8x16x128xbf16>, vector<8x16x128xbf16>, vector<8x16x128xbf16>, vector<8x16x128xbf16>, vector<8x16x128xbf16> -> vector<8x16x1152xbf16>
    %12 = vector.shape_cast %11 : vector<8x16x1152xbf16> to vector<128x1152xbf16>
    %c0_4 = arith.constant 0 : index
    %c0_5 = arith.constant 0 : index
    %13 = vector.load %arg3[%c0_4, %c0_5] : memref<1152x128xbf16, #tpu.memory_space<vmem>>, vector<1152x128xbf16>
    %cst = arith.constant dense<0.000000e+00> : vector<128x128xf32>
    %14 = tpu.matmul %12, %13, %cst {dimension_numbers = #tpu.dot_dimension_numbers<[1], [0], [0], [1], [0, 0, 1, 1], [], []>} : vector<128x1152xbf16>, vector<1152x128xbf16>, vector<128x128xf32> -> vector<128x128xf32>
    %c0_6 = arith.constant 0 : index
    %c0_7 = arith.constant 0 : index
    %c0_8 = arith.constant 0 : index
    %c0_9 = arith.constant 0 : index
    %15 = vector.load %arg4[%c0_6, %c0_7, %c0_8, %c0_9] : memref<1x1x128x128xf32, #tpu.memory_space<vmem>>, vector<1x1x128x128xf32>
    %16 = vector.shape_cast %15 : vector<1x1x128x128xf32> to vector<128x128xf32>
    %17 = vector.shape_cast %14 : vector<128x128xf32> to vector<1x1x128x128xf32>
    tpu.vector_store %arg4[%c0_6, %c0_7, %c0_8, %c0_9], %17 {strides = array<i32>} : memref<1x1x128x128xf32, #tpu.memory_space<vmem>>, vector<1x1x128x128xf32>,
    %cst_10 = arith.constant dense<0.000000e+00> : vector<128xf32>
    %18 = vector.multi_reduction <add>, %14, %cst_10 [0] : vector<128x128xf32> to vector<128xf32>
    %19 = vector.shape_cast %18 : vector<128xf32> to vector<1x128xf32>
    %20 = arith.mulf %14, %14 : vector<128x128xf32>
    %cst_11 = arith.constant dense<0.000000e+00> : vector<128xf32>
    %21 = vector.multi_reduction <add>, %20, %cst_11 [0] : vector<128x128xf32> to vector<128xf32>
    %22 = vector.shape_cast %21 : vector<128xf32> to vector<1x128xf32>
    %cst_12 = arith.constant 0.000000e+00 : f32
    %23 = vector.broadcast %cst_12 : f32 to vector<6x128xf32>
    %24 = tpu.concatenate %19, %22, %23 in 0 : vector<1x128xf32>, vector<1x128xf32>, vector<6x128xf32> -> vector<8x128xf32>
    %c0_13 = arith.constant 0 : index
    %c0_14 = arith.constant 0 : index
    %c0_15 = arith.constant 0 : index
    %c0_16 = arith.constant 0 : index
    %25 = vector.load %arg5[%c0_13, %c0_14, %c0_15, %c0_16] : memref<1x1x8x128xf32, #tpu.memory_space<vmem>>, vector<1x1x8x128xf32>
    %26 = vector.shape_cast %25 : vector<1x1x8x128xf32> to vector<8x128xf32>
    %27 = vector.shape_cast %24 : vector<8x128xf32> to vector<1x1x8x128xf32>
    tpu.vector_store %arg5[%c0_13, %c0_14, %c0_15, %c0_16], %27 {strides = array<i32>} : memref<1x1x8x128xf32, #tpu.memory_space<vmem>>, vector<1x1x8x128xf32>,
    return
  }
  func.func @transform_0(%arg0: i32, %arg1: i32) -> (i32, i32, i32, i32, i32) {
    %c0_i32 = arith.constant 0 : i32
    %c0_i32_0 = arith.constant 0 : i32
    %c0_i32_1 = arith.constant 0 : i32
    %c0_i32_2 = arith.constant 0 : i32
    return %arg0, %arg1, %c0_i32, %c0_i32_0, %c0_i32_1 : i32, i32, i32, i32, i32
  }
  func.func @transform_1(%arg0: i32, %arg1: i32) -> (i32, i32) {
    %c0_i32 = arith.constant 0 : i32
    %c0_i32_0 = arith.constant 0 : i32
    %c0_i32_1 = arith.constant 0 : i32
    return %c0_i32, %c0_i32_0 : i32, i32
  }
  func.func @transform_2(%arg0: i32, %arg1: i32) -> (i32, i32, i32, i32) {
    %c0_i32 = arith.constant 0 : i32
    %c0_i32_0 = arith.constant 0 : i32
    %c0_i32_1 = arith.constant 0 : i32
    return %arg0, %arg1, %c0_i32, %c0_i32_0 : i32, i32, i32, i32
  }
  func.func @transform_3(%arg0: i32, %arg1: i32) -> (i32, i32, i32, i32) {
    %c0_i32 = arith.constant 0 : i32
    %c0_i32_0 = arith.constant 0 : i32
    %c0_i32_1 = arith.constant 0 : i32
    return %arg0, %arg1, %c0_i32, %c0_i32_0 : i32, i32, i32, i32
  }
}

module attributes {stable_mosaic.version = 11 : i64} {
  func.func @_bn_relu_kernel(%arg0: i32, %arg1: i32, %arg2: memref<1x1x128x128xf32, #tpu.memory_space<vmem>>, %arg3: memref<1x128xf32, #tpu.memory_space<vmem>>, %arg4: memref<1x128xf32, #tpu.memory_space<vmem>>, %arg5: memref<1x1x128x128xf32, #tpu.memory_space<vmem>>) attributes {dimension_semantics = [#tpu.dimension_semantics<parallel>, #tpu.dimension_semantics<parallel>], iteration_bounds = array<i64: 2, 2>, scalar_prefetch = 0 : i64, scratch_operands = 0 : i64, tpu.core_type = #tpu.core_type<tc>, window_params = [{transform_indices = @transform_0, window_bounds = array<i64: 1, 1, 128, 128>}, {pipeline_mode = #tpu.pipeline_mode<synchronous>, transform_indices = @transform_1, window_bounds = array<i64: 1, 128>}, {pipeline_mode = #tpu.pipeline_mode<synchronous>, transform_indices = @transform_2, window_bounds = array<i64: 1, 128>}, {transform_indices = @transform_3, window_bounds = array<i64: 1, 1, 128, 128>}]} {
    %c0 = arith.constant 0 : index
    %c0_0 = arith.constant 0 : index
    %c0_1 = arith.constant 0 : index
    %c0_2 = arith.constant 0 : index
    %0 = vector.load %arg2[%c0, %c0_0, %c0_1, %c0_2] : memref<1x1x128x128xf32, #tpu.memory_space<vmem>>, vector<1x1x128x128xf32>
    %1 = vector.shape_cast %0 : vector<1x1x128x128xf32> to vector<128x128xf32>
    %c0_3 = arith.constant 0 : index
    %c0_4 = arith.constant 0 : index
    %2 = vector.load %arg3[%c0_3, %c0_4] : memref<1x128xf32, #tpu.memory_space<vmem>>, vector<1x128xf32>
    %3 = vector.broadcast %2 : vector<1x128xf32> to vector<128x128xf32>
    %4 = arith.mulf %1, %3 : vector<128x128xf32>
    %c0_5 = arith.constant 0 : index
    %c0_6 = arith.constant 0 : index
    %5 = vector.load %arg4[%c0_5, %c0_6] : memref<1x128xf32, #tpu.memory_space<vmem>>, vector<1x128xf32>
    %6 = vector.broadcast %5 : vector<1x128xf32> to vector<128x128xf32>
    %7 = arith.addf %4, %6 : vector<128x128xf32>
    %cst = arith.constant 0.000000e+00 : f32
    %8 = vector.broadcast %cst : f32 to vector<128x128xf32>
    %9 = arith.maximumf %7, %8 : vector<128x128xf32>
    %c0_7 = arith.constant 0 : index
    %c0_8 = arith.constant 0 : index
    %c0_9 = arith.constant 0 : index
    %c0_10 = arith.constant 0 : index
    %10 = vector.load %arg5[%c0_7, %c0_8, %c0_9, %c0_10] : memref<1x1x128x128xf32, #tpu.memory_space<vmem>>, vector<1x1x128x128xf32>
    %11 = vector.shape_cast %10 : vector<1x1x128x128xf32> to vector<128x128xf32>
    %12 = vector.shape_cast %9 : vector<128x128xf32> to vector<1x1x128x128xf32>
    tpu.vector_store %arg5[%c0_7, %c0_8, %c0_9, %c0_10], %12 {strides = array<i32>} : memref<1x1x128x128xf32, #tpu.memory_space<vmem>>, vector<1x1x128x128xf32>,
    return
  }
  func.func @transform_0(%arg0: i32, %arg1: i32) -> (i32, i32, i32, i32) {
    %c0_i32 = arith.constant 0 : i32
    %c0_i32_0 = arith.constant 0 : i32
    %c0_i32_1 = arith.constant 0 : i32
    return %arg0, %arg1, %c0_i32, %c0_i32_0 : i32, i32, i32, i32
  }
  func.func @transform_1(%arg0: i32, %arg1: i32) -> (i32, i32) {
    %c0_i32 = arith.constant 0 : i32
    %c0_i32_0 = arith.constant 0 : i32
    %c0_i32_1 = arith.constant 0 : i32
    return %c0_i32, %c0_i32_0 : i32, i32
  }
  func.func @transform_2(%arg0: i32, %arg1: i32) -> (i32, i32) {
    %c0_i32 = arith.constant 0 : i32
    %c0_i32_0 = arith.constant 0 : i32
    %c0_i32_1 = arith.constant 0 : i32
    return %c0_i32, %c0_i32_0 : i32, i32
  }
  func.func @transform_3(%arg0: i32, %arg1: i32) -> (i32, i32, i32, i32) {
    %c0_i32 = arith.constant 0 : i32
    %c0_i32_0 = arith.constant 0 : i32
    %c0_i32_1 = arith.constant 0 : i32
    return %arg0, %arg1, %c0_i32, %c0_i32_0 : i32, i32, i32, i32
  }
}

</mosaic_0001>

<llo_original>
// kernel: double_conv.5
$region0: #{double_conv.5}
  #allocation0 [shape = 'u32[]', space=smem, size = 0x4, offset = 0x4, fixed_abs, tag = 'smem constant byte address 0x4 - core index']
  #allocation1 [shape = 'u32[144,128]{1,0:T(1,128)}', space=vmem, size = 0x12000, scoped, tag = 'internal scratch']
  %s0 = inlined_call_operand.vmem [shape: f32[2,2,128,128], index: 0, kind: input, shape index: {}]
  %s1 = inlined_call_operand.vmem [shape: f32[1,128], index: 1, kind: input, shape index: {}]
  %s2 = inlined_call_operand.vmem [shape: f32[1,128], index: 2, kind: input, shape index: {}]
  %s3 = inlined_call_operand.vmem [shape: f32[2,2,128,128], index: 3, kind: output, shape index: {}]
  %s4 = sld [smem:[#allocation0]]
  $region45: #{double_conv.5} parent=0
    _
  %s6 = ssub.s32 1, %s4
  %s7 = scalar_select 0, %s6, %s4
  loop: start=0, step=1, limit=6
  $region2: #{double_conv.5} parent=0 // loop_pre_header
    _
  $region3: #{double_conv.5} parent=0 // loop_header
    %s9 = sphi 0, %s13
    %p10 = scmp.ge.s32.totalorder %s9, 6
    %s16 = sphi 0, %s28
    %s17 = sphi 0, %s24
    %s18 = sphi 0, %s16
    %s19 = sphi 0, %s17
    %s20 = sphi 0, %s18
    %s21 = sphi 0, %s19
    %s33 = sphi 0, %s35
    %s36 = sphi 0, %s33
    %s37 = sphi 0, %s36
    %s53 = sphi 0, %s37
    %s57 = sphi 0, %s57
    %s59 = sphi 0, %s57
    %s60 = sphi 0, %s59
    %s74 = sphi 0, %s60
    %s78 = sphi 0, %s78
    %s80 = sphi 0, %s78
    %s81 = sphi 0, %s80
    %s95 = sphi 0, %s81
    %s103 = sphi 0, %s105
    %s106 = sphi 0, %s103
    %s107 = sphi 0, %s106
    %s123 = sphi 0, %s107
  $region4: #{double_conv.5} parent=0 // loop_header_branch
    %12 = sbr.rel (%p10) target = $region8
  $region5: #{double_conv.5} parent=0 // loop_body
    %s14 = ssub.s32 %s9, 1
    %s15 = ssub.s32 %s9, 2
    %s22 = sadd.s32 1, %s17
    %p23 = scmp.ge.s32.totalorder %s22, 2
    %s24 = scalar_select %p23, 0, %s22
    %s25 = sadd.s32 1, %s16
    %s26 = scalar_select %p23, %s25, %s16
    %p27 = scmp.ge.s32.totalorder %s26, 2
    %s28 = scalar_select %p27, 0, %s26
    %s29 = ssub.s32 %s16, %s28
    %s30 = ssub.s32 %s17, %s24
    %s31 = sor.u32 %s29, %s30
    %p32 = scmp.eq.s32.totalorder %s31, 0
    %s34 = sadd.s32 %s33, 1
    %s35 = scalar_select %p32, %s33, %s34
    %p38 = pneg %p32
    %p39 = scmp.eq.s32.totalorder %s9, 3
    %p40 = por %p38, %p39
    %p41 = scmp.ne.s32.totalorder %s33, %s36
    %p42 = scmp.eq.s32.totalorder %s9, 0
    %p43 = por %p41, %p42
    %p44 = scmp.ne.s32.totalorder %s33, %s36
    %p45 = scmp.eq.s32.totalorder %s14, 3
    %p46 = por %p44, %p45
    %p47 = scmp.ne.s32.totalorder %s36, %s37
    %p48 = scmp.eq.s32.totalorder %s14, 0
    %p49 = por %p47, %p48
    %p50 = scmp.ne.s32.totalorder %s36, %s37
    %p51 = scmp.eq.s32.totalorder %s15, 3
    %p52 = por %p50, %p51
    %p54 = scmp.ne.s32.totalorder %s37, %s53
    %p55 = scmp.eq.s32.totalorder %s15, 0
    %p56 = por %p54, %p55
    %s58 = sadd.s32 %s57, 1
    %p61 = scmp.eq.s32.totalorder %s9, 3
    %p62 = scmp.ne.s32.totalorder %s57, %s59
    %p63 = scmp.eq.s32.totalorder %s9, 0
    %p64 = por %p62, %p63
    %p65 = scmp.ne.s32.totalorder %s57, %s59
    %p66 = scmp.eq.s32.totalorder %s14, 3
    %p67 = por %p65, %p66
    %p68 = scmp.ne.s32.totalorder %s59, %s60
    %p69 = scmp.eq.s32.totalorder %s14, 0
    %p70 = por %p68, %p69
    %p71 = scmp.ne.s32.totalorder %s59, %s60
    %p72 = scmp.eq.s32.totalorder %s15, 3
    %p73 = por %p71, %p72
    %p75 = scmp.ne.s32.totalorder %s60, %s74
    %p76 = scmp.eq.s32.totalorder %s15, 0
    %p77 = por %p75, %p76
    %s79 = sadd.s32 %s78, 1
    %p82 = scmp.eq.s32.totalorder %s9, 3
    %p83 = scmp.ne.s32.totalorder %s78, %s80
    %p84 = scmp.eq.s32.totalorder %s9, 0
    %p85 = por %p83, %p84
    %p86 = scmp.ne.s32.totalorder %s78, %s80
    %p87 = scmp.eq.s32.totalorder %s14, 3
    %p88 = por %p86, %p87
    %p89 = scmp.ne.s32.totalorder %s80, %s81
    %p90 = scmp.eq.s32.totalorder %s14, 0
    %p91 = por %p89, %p90
    %p92 = scmp.ne.s32.totalorder %s80, %s81
    %p93 = scmp.eq.s32.totalorder %s15, 3
    %p94 = por %p92, %p93
    %p96 = scmp.ne.s32.totalorder %s81, %s95
    %p97 = scmp.eq.s32.totalorder %s15, 0
    %p98 = por %p96, %p97
    %s99 = ssub.s32 %s16, %s28
    %s100 = ssub.s32 %s17, %s24
    %s101 = sor.u32 %s99, %s100
    %p102 = scmp.eq.s32.totalorder %s101, 0
    %s104 = sadd.s32 %s103, 1
    %s105 = scalar_select %p102, %s103, %s104
    %p108 = pneg %p102
    %p109 = scmp.eq.s32.totalorder %s9, 3
    %p110 = por %p108, %p109
    %p111 = scmp.ne.s32.totalorder %s103, %s106
    %p112 = scmp.eq.s32.totalorder %s9, 0
    %p113 = por %p111, %p112
    %p114 = scmp.ne.s32.totalorder %s103, %s106
    %p115 = scmp.eq.s32.totalorder %s14, 3
    %p116 = por %p114, %p115
    %p117 = scmp.ne.s32.totalorder %s106, %s107
    %p118 = scmp.eq.s32.totalorder %s14, 0
    %p119 = por %p117, %p118
    %p120 = scmp.ne.s32.totalorder %s106, %s107
    %p121 = scmp.eq.s32.totalorder %s15, 3
    %p122 = por %p120, %p121
    %p124 = scmp.ne.s32.totalorder %s107, %s123
    %p125 = scmp.eq.s32.totalorder %s15, 0
    %p126 = por %p124, %p125
    %p127 = scmp.le.s32.totalorder 1, %s9
    %p128 = scmp.lt.s32.totalorder %s9, 5
    %p129 = pnand %p127, %p128
    %p130 = pneg %p129
    // Predicated region
    $region9: #{double_conv.5} parent=5 // pred_check
      _
    $region10: #{double_conv.5} parent=5 // pred_check_branch
      %132 = sbr.rel (%p129) target = $region12
    $region11: #{double_conv.5} parent=5 // pred_region
      %s133 = ssub.s32 %s9, 1
      // Predicated region
      $region13: #{double_conv.5} parent=11 // pred_check
        %p134 = pneg %p70
      $region14: #{double_conv.5} parent=11 // pred_check_branch
        %136 = sbr.rel (%p134) target = $region16
      $region15: #{double_conv.5} parent=11 // pred_region
        _
      $region16: #{double_conv.5} parent=11 // pred_fallthru
        _
      // Predicated region
      $region17: #{double_conv.5} parent=11 // pred_check
        %p137 = pneg %p91
      $region18: #{double_conv.5} parent=11 // pred_check_branch
        %139 = sbr.rel (%p137) target = $region20
      $region19: #{double_conv.5} parent=11 // pred_region
        _
      $region20: #{double_conv.5} parent=11 // pred_fallthru
        _
    $region12: #{double_conv.5} parent=5 // pred_fallthru
      _
    %p140 = scmp.lt.s32.totalorder %s9, 4
    // Predicated region
    $region21: #{double_conv.5} parent=5 // pred_check
      %p141 = pneg %p140
    $region22: #{double_conv.5} parent=5 // pred_check_branch
      %143 = sbr.rel (%p141) target = $region24
    $region23: #{double_conv.5} parent=5 // pred_region
      // Predicated region
      $region25: #{double_conv.5} parent=23 // pred_check
        %p144 = pneg %p43
      $region26: #{double_conv.5} parent=23 // pred_check_branch
        %146 = sbr.rel (%p144) target = $region28
      $region27: #{double_conv.5} parent=23 // pred_region
        %p147 = scmp.lt.s32.totalorder %s16, 1
        %s148 = scalar_select %p147, %s16, 1
        %p149 = scmp.lt.s32.totalorder %s17, 1
        %s150 = scalar_select %p149, %s17, 1
        %s151 = smul.addr %s150, 16
        %s152 = smul.addr %s148, 32
        %s153 = sadd.s32 %s151, %s152
        %s154 = smul.addr %s153, 8
        %s155 = scalar_lea.vmem %s0, %s154
      $region28: #{double_conv.5} parent=23 // pred_fallthru
        _
    $region24: #{double_conv.5} parent=5 // pred_fallthru
      _
    %p156 = scmp.le.s32.totalorder 1, %s9
    %p157 = scmp.lt.s32.totalorder %s9, 5
    %p158 = pnand %p156, %p157
    %p159 = pneg %p158
    // Predicated region
    $region29: #{double_conv.5} parent=5 // pred_check
      _
    $region30: #{double_conv.5} parent=5 // pred_check_branch
      %161 = sbr.rel (%p158) target = $region32
    $region31: #{double_conv.5} parent=5 // pred_region
      %s162 = ssub.s32 %s9, 1
      %p163 = scmp.lt.s32.totalorder %s18, 1
      %s164 = scalar_select %p163, %s18, 1
      %p165 = scmp.lt.s32.totalorder %s19, 1
      %s166 = scalar_select %p165, %s19, 1
      %s167 = smul.addr %s166, 16
      %s168 = smul.addr %s164, 32
      %s169 = sadd.s32 %s167, %s168
      %s170 = smul.addr %s169, 8
      %s171 = scalar_lea.vmem %s0, %s170
      %p172 = pneg %p49
      %p173 = pneg %p46
      %p174 = pneg %p70
      %p175 = pneg %p67
      %p176 = pneg %p91
      %p177 = pneg %p88
      %p178 = pneg %p119
      %p179 = pneg %p116
      %p180 = scmp.lt.s32.totalorder %s18, 1
      %s181 = scalar_select %p180, %s18, 1
      %p182 = scmp.lt.s32.totalorder %s19, 1
      %s183 = scalar_select %p182, %s19, 1
      %s184 = smul.addr %s183, 16
      %s185 = smul.addr %s181, 32
      %s186 = sadd.s32 %s184, %s185
      %s187 = smul.addr %s186, 8
      %s188 = scalar_lea.vmem %s3, %s187
      %p189 = scmp.lt.s32.totalorder %s18, 1
      %s190 = scalar_select %p189, %s18, 1
      %p191 = scmp.lt.s32.totalorder %s19, 1
      %s192 = scalar_select %p191, %s19, 1
      %s193 = smul.addr %s192, 16
      %s194 = smul.addr %s190, 32
      %s195 = sadd.s32 %s193, %s194
      %s196 = smul.addr %s195, 8
      %s197 = scalar_lea.vmem %s0, %s196
      %p198 = scmp.lt.s32.totalorder %s18, 1
      %s199 = scalar_select %p198, %s18, 1
      %p200 = scmp.lt.s32.totalorder %s19, 1
      %s201 = scalar_select %p200, %s19, 1
      %s202 = smul.addr %s201, 16
      %s203 = smul.addr %s199, 32
      %s204 = sadd.s32 %s202, %s203
      %s205 = smul.addr %s204, 8
      %s206 = scalar_lea.vmem %s3, %s205
      %v207 = vld [vmem:[%s197] sm:$0xff]
      %v208 = vld [vmem:[%s197 + $0x8] sm:$0xff]
      %v209 = vld [vmem:[%s197 + $0x10] sm:$0xff]
      %v210 = vld [vmem:[%s197 + $0x18] sm:$0xff]
      %v211 = vld [vmem:[%s197 + $0x20] sm:$0xff]
      %v212 = vld [vmem:[%s197 + $0x28] sm:$0xff]
      %v213 = vld [vmem:[%s197 + $0x30] sm:$0xff]
      %v214 = vld [vmem:[%s197 + $0x38] sm:$0xff]
      %v215 = vld [vmem:[%s197 + $0x40] sm:$0xff]
      %v216 = vld [vmem:[%s197 + $0x48] sm:$0xff]
      %v217 = vld [vmem:[%s197 + $0x50] sm:$0xff]
      %v218 = vld [vmem:[%s197 + $0x58] sm:$0xff]
      %v219 = vld [vmem:[%s197 + $0x60] sm:$0xff]
      %v220 = vld [vmem:[%s197 + $0x68] sm:$0xff]
      %v221 = vld [vmem:[%s197 + $0x70] sm:$0xff]
      %v222 = vld [vmem:[%s197 + $0x78] sm:$0xff]
      %v223 = vld [vmem:[%s1] sm:$0x1]
      %v225 = vlaneseq
      %v226 = vshrl.u32 %v225, 7
      %v227 = vsub.s32 0, %v226
      %v228 = vrot.slane %v223, %v227
      %v230 = vmul.f32 %v207, %v228
      %v231 = vmul.f32 %v208, %v228
      %v232 = vmul.f32 %v209, %v228
      %v233 = vmul.f32 %v210, %v228
      %v234 = vmul.f32 %v211, %v228
      %v235 = vmul.f32 %v212, %v228
      %v236 = vmul.f32 %v213, %v228
      %v237 = vmul.f32 %v214, %v228
      %v238 = vmul.f32 %v215, %v228
      %v239 = vmul.f32 %v216, %v228
      %v240 = vmul.f32 %v217, %v228
      %v241 = vmul.f32 %v218, %v228
      %v242 = vmul.f32 %v219, %v228
      %v243 = vmul.f32 %v220, %v228
      %v244 = vmul.f32 %v221, %v228
      %v245 = vmul.f32 %v222, %v228
      %v246 = vld [vmem:[%s2] sm:$0x1]
      %v248 = vlaneseq
      %v249 = vshrl.u32 %v248, 7
      %v250 = vsub.s32 0, %v249
      %v251 = vrot.slane %v246, %v250
      %v253 = vadd.f32 %v230, %v251
      %v254 = vadd.f32 %v231, %v251
      %v255 = vadd.f32 %v232, %v251
      %v256 = vadd.f32 %v233, %v251
      %v257 = vadd.f32 %v234, %v251
      %v258 = vadd.f32 %v235, %v251
      %v259 = vadd.f32 %v236, %v251
      %v260 = vadd.f32 %v237, %v251
      %v261 = vadd.f32 %v238, %v251
      %v262 = vadd.f32 %v239, %v251
      %v263 = vadd.f32 %v240, %v251
      %v264 = vadd.f32 %v241, %v251
      %v265 = vadd.f32 %v242, %v251
      %v266 = vadd.f32 %v243, %v251
      %v267 = vadd.f32 %v244, %v251
      %v268 = vadd.f32 %v245, %v251
      %v269 = vmax.f32 %v253, 0.0
      %v270 = vmax.f32 %v254, 0.0
      %v271 = vmax.f32 %v255, 0.0
      %v272 = vmax.f32 %v256, 0.0
      %v273 = vmax.f32 %v257, 0.0
      %v274 = vmax.f32 %v258, 0.0
      %v275 = vmax.f32 %v259, 0.0
      %v276 = vmax.f32 %v260, 0.0
      %v277 = vmax.f32 %v261, 0.0
      %v278 = vmax.f32 %v262, 0.0
      %v279 = vmax.f32 %v263, 0.0
      %v280 = vmax.f32 %v264, 0.0
      %v281 = vmax.f32 %v265, 0.0
      %v282 = vmax.f32 %v266, 0.0
      %v283 = vmax.f32 %v267, 0.0
      %v284 = vmax.f32 %v268, 0.0
      %285 = vst [vmem:[%s206] sm:$0xff] %v269
      %286 = vst [vmem:[%s206 + $0x8] sm:$0xff] %v270
      %287 = vst [vmem:[%s206 + $0x10] sm:$0xff] %v271
      %288 = vst [vmem:[%s206 + $0x18] sm:$0xff] %v272
      %289 = vst [vmem:[%s206 + $0x20] sm:$0xff] %v273
      %290 = vst [vmem:[%s206 + $0x28] sm:$0xff] %v274
      %291 = vst [vmem:[%s206 + $0x30] sm:$0xff] %v275
      %292 = vst [vmem:[%s206 + $0x38] sm:$0xff] %v276
      %293 = vst [vmem:[%s206 + $0x40] sm:$0xff] %v277
      %294 = vst [vmem:[%s206 + $0x48] sm:$0xff] %v278
      %295 = vst [vmem:[%s206 + $0x50] sm:$0xff] %v279
      %296 = vst [vmem:[%s206 + $0x58] sm:$0xff] %v280
      %297 = vst [vmem:[%s206 + $0x60] sm:$0xff] %v281
      %298 = vst [vmem:[%s206 + $0x68] sm:$0xff] %v282
      %299 = vst [vmem:[%s206 + $0x70] sm:$0xff] %v283
      %300 = vst [vmem:[%s206 + $0x78] sm:$0xff] %v284
      %p301 = scmp.lt.s32.totalorder %s18, 1
      %s302 = scalar_select %p301, %s18, 1
      %p303 = scmp.lt.s32.totalorder %s19, 1
      %s304 = scalar_select %p303, %s19, 1
      %s305 = smul.addr %s304, 16
      %s306 = smul.addr %s302, 32
      %s307 = sadd.s32 %s305, %s306
      %s308 = smul.addr %s307, 8
      %s309 = scalar_lea.vmem %s3, %s308
      // Predicated region
      $region33: #{double_conv.5} parent=31 // pred_check
        %p310 = pneg %p116
      $region34: #{double_conv.5} parent=31 // pred_check_branch
        %312 = sbr.rel (%p310) target = $region36
      $region35: #{double_conv.5} parent=31 // pred_region
        _
      $region36: #{double_conv.5} parent=31 // pred_fallthru
        _
    $region32: #{double_conv.5} parent=5 // pred_fallthru
      _
    %p313 = scmp.le.s32.totalorder 2, %s9
    // Predicated region
    $region37: #{double_conv.5} parent=5 // pred_check
      %p314 = pneg %p313
    $region38: #{double_conv.5} parent=5 // pred_check_branch
      %316 = sbr.rel (%p314) target = $region40
    $region39: #{double_conv.5} parent=5 // pred_region
      %s317 = ssub.s32 %s9, 2
      // Predicated region
      $region41: #{double_conv.5} parent=39 // pred_check
        %p318 = pneg %p122
      $region42: #{double_conv.5} parent=39 // pred_check_branch
        %320 = sbr.rel (%p318) target = $region44
      $region43: #{double_conv.5} parent=39 // pred_region
        %p321 = scmp.lt.s32.totalorder %s20, 1
        %s322 = scalar_select %p321, %s20, 1
        %p323 = scmp.lt.s32.totalorder %s21, 1
        %s324 = scalar_select %p323, %s21, 1
        %s325 = smul.addr %s324, 16
        %s326 = smul.addr %s322, 32
        %s327 = sadd.s32 %s325, %s326
        %s328 = smul.addr %s327, 8
        %s329 = scalar_lea.vmem %s3, %s328
      $region44: #{double_conv.5} parent=39 // pred_fallthru
        _
    $region40: #{double_conv.5} parent=5 // pred_fallthru
      _
  $region6: #{double_conv.5} parent=0 // loop_footer
    %s13 = sadd.s32 1, %s9
  $region7: #{double_conv.5} parent=0 // loop_footer_branch
    %8 = sbr.rel target = $region3
  $region8: #{double_conv.5} parent=0 // loop_exit
    _

// kernel: double_conv.4
$region0: #{double_conv.4}
  #allocation0 [shape = 'u32[]', space=smem, size = 0x4, offset = 0x4, fixed_abs, tag = 'smem constant byte address 0x4 - core index']
  #allocation1 [shape = 'u32[144,128]{1,0:T(1,128)}', space=vmem, size = 0x12000, scoped, tag = 'internal scratch']
  %s0 = inlined_call_operand.vmem [shape: bf16[2,2,10,18,128], index: 0, kind: input, shape index: {}]
  %s1 = inlined_call_operand.vmem [shape: bf16[1152,128], index: 1, kind: input, shape index: {}]
  %s2 = inlined_call_operand.vmem [shape: f32[2,2,128,128], index: 2, kind: output, shape index: {0}]
  %s3 = inlined_call_operand.vmem [shape: f32[2,2,8,128], index: 3, kind: output, shape index: {1}]
  %4 = xla_tuple %s2, %s3
  %s5 = sld [smem:[#allocation0]]
  $region49: #{double_conv.4} parent=0
    _
  %s7 = ssub.s32 1, %s5
  %s8 = scalar_select 0, %s7, %s5
  loop: start=0, step=1, limit=6
  $region2: #{double_conv.4} parent=0 // loop_pre_header
    _
  $region3: #{double_conv.4} parent=0 // loop_header
    %s10 = sphi 0, %s14
    %p11 = scmp.ge.s32.totalorder %s10, 6
    %s17 = sphi 0, %s29
    %s18 = sphi 0, %s25
    %s19 = sphi 0, %s17
    %s20 = sphi 0, %s18
    %s21 = sphi 0, %s19
    %s22 = sphi 0, %s20
    %s34 = sphi 0, %s36
    %s37 = sphi 0, %s34
    %s38 = sphi 0, %s37
    %s54 = sphi 0, %s38
    %s58 = sphi 0, %s58
    %s60 = sphi 0, %s58
    %s61 = sphi 0, %s60
    %s75 = sphi 0, %s61
    %s83 = sphi 0, %s85
    %s86 = sphi 0, %s83
    %s87 = sphi 0, %s86
    %s103 = sphi 0, %s87
    %s111 = sphi 0, %s113
    %s114 = sphi 0, %s111
    %s115 = sphi 0, %s114
    %s131 = sphi 0, %s115
  $region4: #{double_conv.4} parent=0 // loop_header_branch
    %13 = sbr.rel (%p11) target = $region8
  $region5: #{double_conv.4} parent=0 // loop_body
    %s15 = ssub.s32 %s10, 1
    %s16 = ssub.s32 %s10, 2
    %s23 = sadd.s32 1, %s18
    %p24 = scmp.ge.s32.totalorder %s23, 2
    %s25 = scalar_select %p24, 0, %s23
    %s26 = sadd.s32 1, %s17
    %s27 = scalar_select %p24, %s26, %s17
    %p28 = scmp.ge.s32.totalorder %s27, 2
    %s29 = scalar_select %p28, 0, %s27
    %s30 = ssub.s32 %s17, %s29
    %s31 = ssub.s32 %s18, %s25
    %s32 = sor.u32 %s30, %s31
    %p33 = scmp.eq.s32.totalorder %s32, 0
    %s35 = sadd.s32 %s34, 1
    %s36 = scalar_select %p33, %s34, %s35
    %p39 = pneg %p33
    %p40 = scmp.eq.s32.totalorder %s10, 3
    %p41 = por %p39, %p40
    %p42 = scmp.ne.s32.totalorder %s34, %s37
    %p43 = scmp.eq.s32.totalorder %s10, 0
    %p44 = por %p42, %p43
    %p45 = scmp.ne.s32.totalorder %s34, %s37
    %p46 = scmp.eq.s32.totalorder %s15, 3
    %p47 = por %p45, %p46
    %p48 = scmp.ne.s32.totalorder %s37, %s38
    %p49 = scmp.eq.s32.totalorder %s15, 0
    %p50 = por %p48, %p49
    %p51 = scmp.ne.s32.totalorder %s37, %s38
    %p52 = scmp.eq.s32.totalorder %s16, 3
    %p53 = por %p51, %p52
    %p55 = scmp.ne.s32.totalorder %s38, %s54
    %p56 = scmp.eq.s32.totalorder %s16, 0
    %p57 = por %p55, %p56
    %s59 = sadd.s32 %s58, 1
    %p62 = scmp.eq.s32.totalorder %s10, 3
    %p63 = scmp.ne.s32.totalorder %s58, %s60
    %p64 = scmp.eq.s32.totalorder %s10, 0
    %p65 = por %p63, %p64
    %p66 = scmp.ne.s32.totalorder %s58, %s60
    %p67 = scmp.eq.s32.totalorder %s15, 3
    %p68 = por %p66, %p67
    %p69 = scmp.ne.s32.totalorder %s60, %s61
    %p70 = scmp.eq.s32.totalorder %s15, 0
    %p71 = por %p69, %p70
    %p72 = scmp.ne.s32.totalorder %s60, %s61
    %p73 = scmp.eq.s32.totalorder %s16, 3
    %p74 = por %p72, %p73
    %p76 = scmp.ne.s32.totalorder %s61, %s75
    %p77 = scmp.eq.s32.totalorder %s16, 0
    %p78 = por %p76, %p77
    %s79 = ssub.s32 %s17, %s29
    %s80 = ssub.s32 %s18, %s25
    %s81 = sor.u32 %s79, %s80
    %p82 = scmp.eq.s32.totalorder %s81, 0
    %s84 = sadd.s32 %s83, 1
    %s85 = scalar_select %p82, %s83, %s84
    %p88 = pneg %p82
    %p89 = scmp.eq.s32.totalorder %s10, 3
    %p90 = por %p88, %p89
    %p91 = scmp.ne.s32.totalorder %s83, %s86
    %p92 = scmp.eq.s32.totalorder %s10, 0
    %p93 = por %p91, %p92
    %p94 = scmp.ne.s32.totalorder %s83, %s86
    %p95 = scmp.eq.s32.totalorder %s15, 3
    %p96 = por %p94, %p95
    %p97 = scmp.ne.s32.totalorder %s86, %s87
    %p98 = scmp.eq.s32.totalorder %s15, 0
    %p99 = por %p97, %p98
    %p100 = scmp.ne.s32.totalorder %s86, %s87
    %p101 = scmp.eq.s32.totalorder %s16, 3
    %p102 = por %p100, %p101
    %p104 = scmp.ne.s32.totalorder %s87, %s103
    %p105 = scmp.eq.s32.totalorder %s16, 0
    %p106 = por %p104, %p105
    %s107 = ssub.s32 %s17, %s29
    %s108 = ssub.s32 %s18, %s25
    %s109 = sor.u32 %s107, %s108
    %p110 = scmp.eq.s32.totalorder %s109, 0
    %s112 = sadd.s32 %s111, 1
    %s113 = scalar_select %p110, %s111, %s112
    %p116 = pneg %p110
    %p117 = scmp.eq.s32.totalorder %s10, 3
    %p118 = por %p116, %p117
    %p119 = scmp.ne.s32.totalorder %s111, %s114
    %p120 = scmp.eq.s32.totalorder %s10, 0
    %p121 = por %p119, %p120
    %p122 = scmp.ne.s32.totalorder %s111, %s114
    %p123 = scmp.eq.s32.totalorder %s15, 3
    %p124 = por %p122, %p123
    %p125 = scmp.ne.s32.totalorder %s114, %s115
    %p126 = scmp.eq.s32.totalorder %s15, 0
    %p127 = por %p125, %p126
    %p128 = scmp.ne.s32.totalorder %s114, %s115
    %p129 = scmp.eq.s32.totalorder %s16, 3
    %p130 = por %p128, %p129
    %p132 = scmp.ne.s32.totalorder %s115, %s131
    %p133 = scmp.eq.s32.totalorder %s16, 0
    %p134 = por %p132, %p133
    %p135 = scmp.le.s32.totalorder 1, %s10
    %p136 = scmp.lt.s32.totalorder %s10, 5
    %p137 = pnand %p135, %p136
    %p138 = pneg %p137
    // Predicated region
    $region9: #{double_conv.4} parent=5 // pred_check
      _
    $region10: #{double_conv.4} parent=5 // pred_check_branch
      %140 = sbr.rel (%p137) target = $region12
    $region11: #{double_conv.4} parent=5 // pred_region
      %s141 = ssub.s32 %s10, 1
      // Predicated region
      $region13: #{double_conv.4} parent=11 // pred_check
        %p142 = pneg %p71
      $region14: #{double_conv.4} parent=11 // pred_check_branch
        %144 = sbr.rel (%p142) target = $region16
      $region15: #{double_conv.4} parent=11 // pred_region
        _
      $region16: #{double_conv.4} parent=11 // pred_fallthru
        _
    $region12: #{double_conv.4} parent=5 // pred_fallthru
      _
    %p145 = scmp.lt.s32.totalorder %s10, 4
    // Predicated region
    $region17: #{double_conv.4} parent=5 // pred_check
      %p146 = pneg %p145
    $region18: #{double_conv.4} parent=5 // pred_check_branch
      %148 = sbr.rel (%p146) target = $region20
    $region19: #{double_conv.4} parent=5 // pred_region
      // Predicated region
      $region21: #{double_conv.4} parent=19 // pred_check
        %p149 = pneg %p44
      $region22: #{double_conv.4} parent=19 // pred_check_branch
        %151 = sbr.rel (%p149) target = $region24
      $region23: #{double_conv.4} parent=19 // pred_region
        %p152 = scmp.lt.s32.totalorder %s17, 1
        %s153 = scalar_select %p152, %s17, 1
        %p154 = scmp.lt.s32.totalorder %s18, 1
        %s155 = scalar_select %p154, %s18, 1
        %s156 = smul.addr %s155, 30
        %s157 = smul.addr %s153, 60
        %s158 = sadd.s32 %s156, %s157
        %s159 = smul.addr %s158, 4
        %s160 = scalar_lea.vmem %s0, %s159
      $region24: #{double_conv.4} parent=19 // pred_fallthru
        _
    $region20: #{double_conv.4} parent=5 // pred_fallthru
      _
    %p161 = scmp.le.s32.totalorder 1, %s10
    %p162 = scmp.lt.s32.totalorder %s10, 5
    %p163 = pnand %p161, %p162
    %p164 = pneg %p163
    // Predicated region
    $region25: #{double_conv.4} parent=5 // pred_check
      _
    $region26: #{double_conv.4} parent=5 // pred_check_branch
      %166 = sbr.rel (%p163) target = $region28
    $region27: #{double_conv.4} parent=5 // pred_region
      %s167 = ssub.s32 %s10, 1
      %p168 = scmp.lt.s32.totalorder %s19, 1
      %s169 = scalar_select %p168, %s19, 1
      %p170 = scmp.lt.s32.totalorder %s20, 1
      %s171 = scalar_select %p170, %s20, 1
      %s172 = smul.addr %s171, 30
      %s173 = smul.addr %s169, 60
      %s174 = sadd.s32 %s172, %s173
      %s175 = smul.addr %s174, 4
      %s176 = scalar_lea.vmem %s0, %s175
      %p177 = pneg %p50
      %p178 = pneg %p47
      %p179 = pneg %p71
      %p180 = pneg %p68
      %p181 = pneg %p99
      %p182 = pneg %p96
      %p183 = scmp.lt.s32.totalorder %s19, 1
      %s184 = scalar_select %p183, %s19, 1
      %p185 = scmp.lt.s32.totalorder %s20, 1
      %s186 = scalar_select %p185, %s20, 1
      %s187 = smul.addr %s186, 16
      %s188 = smul.addr %s184, 32
      %s189 = sadd.s32 %s187, %s188
      %s190 = smul.addr %s189, 8
      %s191 = scalar_lea.vmem %s2, %s190
      %p192 = pneg %p127
      %p193 = pneg %p124
      %p194 = scmp.lt.s32.totalorder %s19, 1
      %s195 = scalar_select %p194, %s19, 1
      %p196 = scmp.lt.s32.totalorder %s20, 1
      %s197 = scalar_select %p196, %s20, 1
      %s198 = smul.addr %s195, 2
      %s199 = sadd.s32 %s197, %s198
      %s200 = smul.addr %s199, 8
      %s201 = scalar_lea.vmem %s3, %s200
      %p202 = scmp.lt.s32.totalorder %s19, 1
      %s203 = scalar_select %p202, %s19, 1
      %p204 = scmp.lt.s32.totalorder %s20, 1
      %s205 = scalar_select %p204, %s20, 1
      %s206 = smul.addr %s205, 30
      %s207 = smul.addr %s203, 60
      %s208 = sadd.s32 %s206, %s207
      %s209 = smul.addr %s208, 4
      %s210 = scalar_lea.vmem %s0, %s209
      %p211 = scmp.lt.s32.totalorder %s19, 1
      %s212 = scalar_select %p211, %s19, 1
      %p213 = scmp.lt.s32.totalorder %s20, 1
      %s214 = scalar_select %p213, %s20, 1
      %s215 = smul.addr %s214, 16
      %s216 = smul.addr %s212, 32
      %s217 = sadd.s32 %s215, %s216
      %s218 = smul.addr %s217, 8
      %s219 = scalar_lea.vmem %s2, %s218
      %p220 = scmp.lt.s32.totalorder %s19, 1
      %s221 = scalar_select %p220, %s19, 1
      %p222 = scmp.lt.s32.totalorder %s20, 1
      %s223 = scalar_select %p222, %s20, 1
      %s224 = smul.addr %s221, 2
      %s225 = sadd.s32 %s223, %s224
      %s226 = smul.addr %s225, 8
      %s227 = scalar_lea.vmem %s3, %s226
      %v229 = vld [vmem:[%s210] sm:$0xf]
      %v230 = vld [vmem:[%s210 + $0x4] sm:$0xf]
      %v231 = vld [vmem:[%s210 + $0x8] sm:$0x1]
      %v232 = vld [vmem:[%s210 + $0xc] sm:$0xf]
      %v233 = vld [vmem:[%s210 + $0x10] sm:$0xf]
      %v234 = vld [vmem:[%s210 + $0x14] sm:$0x1]
      %v235 = vld [vmem:[%s210 + $0x18] sm:$0xf]
      %v236 = vld [vmem:[%s210 + $0x1c] sm:$0xf]
      %v237 = vld [vmem:[%s210 + $0x20] sm:$0x1]
      %v238 = vld [vmem:[%s210 + $0x24] sm:$0xf]
      %v239 = vld [vmem:[%s210 + $0x28] sm:$0xf]
      %v240 = vld [vmem:[%s210 + $0x2c] sm:$0x1]
      %v241 = vld [vmem:[%s210 + $0x30] sm:$0xf]
      %v242 = vld [vmem:[%s210 + $0x34] sm:$0xf]
      %v243 = vld [vmem:[%s210 + $0x38] sm:$0x1]
      %v244 = vld [vmem:[%s210 + $0x3c] sm:$0xf]
      %v245 = vld [vmem:[%s210 + $0x40] sm:$0xf]
      %v246 = vld [vmem:[%s210 + $0x44] sm:$0x1]
      %v247 = vld [vmem:[%s210 + $0x48] sm:$0xf]
      %v248 = vld [vmem:[%s210 + $0x4c] sm:$0xf]
      %v249 = vld [vmem:[%s210 + $0x50] sm:$0x1]
      %v250 = vld [vmem:[%s210 + $0x54] sm:$0xf]
      %v251 = vld [vmem:[%s210 + $0x58] sm:$0xf]
      %v252 = vld [vmem:[%s210 + $0x5c] sm:$0x1]
      %v253 = vld [vmem:[%s210 + $0x60] sm:$0xf]
      %v254 = vld [vmem:[%s210 + $0x64] sm:$0xf]
      %v255 = vld [vmem:[%s210 + $0x68] sm:$0x1]
      %v256 = vld [vmem:[%s210 + $0x6c] sm:$0xf]
      %v257 = vld [vmem:[%s210 + $0x70] sm:$0xf]
      %v258 = vld [vmem:[%s210 + $0x74] sm:$0x1]
      %v275 = vunpack.c.l.b16 %v229
      %v276 = vunpack.c.l.b16 %v230
      %v277 = vunpack.c.l.b16 %v232
      %v278 = vunpack.c.l.b16 %v233
      %v279 = vunpack.c.l.b16 %v235
      %v280 = vunpack.c.l.b16 %v236
      %v281 = vunpack.c.l.b16 %v238
      %v282 = vunpack.c.l.b16 %v239
      %v283 = vunpack.c.l.b16 %v241
      %v284 = vunpack.c.l.b16 %v242
      %v285 = vunpack.c.l.b16 %v244
      %v286 = vunpack.c.l.b16 %v245
      %v287 = vunpack.c.l.b16 %v247
      %v288 = vunpack.c.l.b16 %v248
      %v289 = vunpack.c.l.b16 %v250
      %v290 = vunpack.c.l.b16 %v251
      %v291 = vpack.c.b16 %v276, %v275
      %v292 = vpack.c.b16 %v278, %v277
      %v293 = vpack.c.b16 %v280, %v279
      %v294 = vpack.c.b16 %v282, %v281
      %v295 = vpack.c.b16 %v284, %v283
      %v296 = vpack.c.b16 %v286, %v285
      %v297 = vpack.c.b16 %v288, %v287
      %v298 = vpack.c.b16 %v290, %v289
      %v315 = vunpack.c.l.b16 %v231
      %v316 = vunpack.c.l.b16 %v234
      %v317 = vunpack.c.l.b16 %v237
      %v318 = vunpack.c.l.b16 %v240
      %v319 = vunpack.c.l.b16 %v243
      %v320 = vunpack.c.l.b16 %v246
      %v321 = vunpack.c.l.b16 %v249
      %v322 = vunpack.c.l.b16 %v252
      %v323 = vpack.c.b16 %v315, %v315
      %v324 = vpack.c.b16 %v316, %v316
      %v325 = vpack.c.b16 %v317, %v317
      %v326 = vpack.c.b16 %v318, %v318
      %v327 = vpack.c.b16 %v319, %v319
      %v328 = vpack.c.b16 %v320, %v320
      %v329 = vpack.c.b16 %v321, %v321
      %v330 = vpack.c.b16 %v322, %v322
      %vm331 = vsmask.f32 7424
      %v333 = vshrl.u32 %v291, 16
      %v335 = vshll.u32 %v291, 16
      %v337 = vrot.slane %v335, 1
      %v338 = vor.u32 %v333, %v337
      %v340 = vshll.u32 %v323, 16
      %v342 = vrot.slane %v340, 1
      %v343 = vsel %vm331, %v338, %v342
      %v345 = vshrl.u32 %v292, 16
      %v347 = vshll.u32 %v292, 16
      %v349 = vrot.slane %v347, 1
      %v350 = vor.u32 %v345, %v349
      %v352 = vshll.u32 %v324, 16
      %v354 = vrot.slane %v352, 1
      %v355 = vsel %vm331, %v350, %v354
      %v357 = vshrl.u32 %v293, 16
      %v359 = vshll.u32 %v293, 16
      %v361 = vrot.slane %v359, 1
      %v362 = vor.u32 %v357, %v361
      %v364 = vshll.u32 %v325, 16
      %v366 = vrot.slane %v364, 1
      %v367 = vsel %vm331, %v362, %v366
      %v369 = vshrl.u32 %v294, 16
      %v371 = vshll.u32 %v294, 16
      %v373 = vrot.slane %v371, 1
      %v374 = vor.u32 %v369, %v373
      %v376 = vshll.u32 %v326, 16
      %v378 = vrot.slane %v376, 1
      %v379 = vsel %vm331, %v374, %v378
      %v381 = vshrl.u32 %v295, 16
      %v383 = vshll.u32 %v295, 16
      %v385 = vrot.slane %v383, 1
      %v386 = vor.u32 %v381, %v385
      %v388 = vshll.u32 %v327, 16
      %v390 = vrot.slane %v388, 1
      %v391 = vsel %vm331, %v386, %v390
      %v393 = vshrl.u32 %v296, 16
      %v395 = vshll.u32 %v296, 16
      %v397 = vrot.slane %v395, 1
      %v398 = vor.u32 %v393, %v397
      %v400 = vshll.u32 %v328, 16
      %v402 = vrot.slane %v400, 1
      %v403 = vsel %vm331, %v398, %v402
      %v405 = vshrl.u32 %v297, 16
      %v407 = vshll.u32 %v297, 16
      %v409 = vrot.slane %v407, 1
      %v410 = vor.u32 %v405, %v409
      %v412 = vshll.u32 %v329, 16
      %v414 = vrot.slane %v412, 1
      %v415 = vsel %vm331, %v410, %v414
      %v417 = vshrl.u32 %v298, 16
      %v419 = vshll.u32 %v298, 16
      %v421 = vrot.slane %v419, 1
      %v422 = vor.u32 %v417, %v421
      %v424 = vshll.u32 %v330, 16
      %v426 = vrot.slane %v424, 1
      %v427 = vsel %vm331, %v422, %v426
      %vm436 = vcmask 1046528
      %v437 = vrot.slane %v291, 1
      %v438 = vrot.slane %v323, 1
      %v439 = vsel %vm436, %v437, %v438
      %v440 = vrot.slane %v292, 1
      %v441 = vrot.slane %v324, 1
      %v442 = vsel %vm436, %v440, %v441
      %v443 = vrot.slane %v293, 1
      %v444 = vrot.slane %v325, 1
      %v445 = vsel %vm436, %v443, %v444
      %v446 = vrot.slane %v294, 1
      %v447 = vrot.slane %v326, 1
      %v448 = vsel %vm436, %v446, %v447
      %v449 = vrot.slane %v295, 1
      %v450 = vrot.slane %v327, 1
      %v451 = vsel %vm436, %v449, %v450
      %v452 = vrot.slane %v296, 1
      %v453 = vrot.slane %v328, 1
      %v454 = vsel %vm436, %v452, %v453
      %v455 = vrot.slane %v297, 1
      %v456 = vrot.slane %v329, 1
      %v457 = vsel %vm436, %v455, %v456
      %v458 = vrot.slane %v298, 1
      %v459 = vrot.slane %v330, 1
      %v460 = vsel %vm436, %v458, %v459
      %v471 = vunpack.c.l.b16 %v253
      %v472 = vunpack.c.l.b16 %v254
      %v473 = vpack.c.b16 %v472, %v471
      %v476 = vunpack.c.l.b16 %v255
      %v477 = vpack.c.b16 %v476, %v476
      %v479 = vshrl.u32 %v473, 16
      %v481 = vshll.u32 %v473, 16
      %v483 = vrot.slane %v481, 1
      %v484 = vor.u32 %v479, %v483
      %v486 = vshll.u32 %v477, 16
      %v488 = vrot.slane %v486, 1
      %v489 = vsel %vm331, %v484, %v488
      %v491 = vrot.slane %v473, 1
      %v492 = vrot.slane %v477, 1
      %v493 = vsel %vm436, %v491, %v492
      %v497 = vunpack.c.l.b16 %v256
      %v498 = vunpack.c.l.b16 %v257
      %v499 = vpack.c.b16 %v498, %v497
      %v502 = vunpack.c.l.b16 %v258
      %v503 = vpack.c.b16 %v502, %v502
      %v505 = vshrl.u32 %v499, 16
      %v507 = vshll.u32 %v499, 16
      %v509 = vrot.slane %v507, 1
      %v510 = vor.u32 %v505, %v509
      %v512 = vshll.u32 %v503, 16
      %v514 = vrot.slane %v512, 1
      %v515 = vsel %vm331, %v510, %v514
      %v517 = vrot.slane %v499, 1
      %v518 = vrot.slane %v503, 1
      %v519 = vsel %vm436, %v517, %v518
      %v521 = vld [vmem:[%s1] sm:$0xf]
      %v522 = vld [vmem:[%s1 + $0x4] sm:$0xf]
      %v523 = vld [vmem:[%s1 + $0x8] sm:$0xf]
      %v524 = vld [vmem:[%s1 + $0xc] sm:$0xf]
      %v525 = vld [vmem:[%s1 + $0x10] sm:$0xf]
      %v526 = vld [vmem:[%s1 + $0x14] sm:$0xf]
      %v527 = vld [vmem:[%s1 + $0x18] sm:$0xf]
      %v528 = vld [vmem:[%s1 + $0x1c] sm:$0xf]
      %v529 = vld [vmem:[%s1 + $0x20] sm:$0xf]
      %v530 = vld [vmem:[%s1 + $0x24] sm:$0xf]
      %v531 = vld [vmem:[%s1 + $0x28] sm:$0xf]
      %v532 = vld [vmem:[%s1 + $0x2c] sm:$0xf]
      %v533 = vld [vmem:[%s1 + $0x30] sm:$0xf]
      %v534 = vld [vmem:[%s1 + $0x34] sm:$0xf]
      %v535 = vld [vmem:[%s1 + $0x38] sm:$0xf]
      %v536 = vld [vmem:[%s1 + $0x3c] sm:$0xf]
      %v537 = vld [vmem:[%s1 + $0x40] sm:$0xf]
      %v538 = vld [vmem:[%s1 + $0x44] sm:$0xf]
      %v539 = vld [vmem:[%s1 + $0x48] sm:$0xf]
      %v540 = vld [vmem:[%s1 + $0x4c] sm:$0xf]
      %v541 = vld [vmem:[%s1 + $0x50] sm:$0xf]
      %v542 = vld [vmem:[%s1 + $0x54] sm:$0xf]
      %v543 = vld [vmem:[%s1 + $0x58] sm:$0xf]
      %v544 = vld [vmem:[%s1 + $0x5c] sm:$0xf]
      %v545 = vld [vmem:[%s1 + $0x60] sm:$0xf]
      %v546 = vld [vmem:[%s1 + $0x64] sm:$0xf]
      %v547 = vld [vmem:[%s1 + $0x68] sm:$0xf]
      %v548 = vld [vmem:[%s1 + $0x6c] sm:$0xf]
      %v549 = vld [vmem:[%s1 + $0x70] sm:$0xf]
      %v550 = vld [vmem:[%s1 + $0x74] sm:$0xf]
      %v551 = vld [vmem:[%s1 + $0x78] sm:$0xf]
      %v552 = vld [vmem:[%s1 + $0x7c] sm:$0xf]
      %v553 = vld [vmem:[%s1 + $0x80] sm:$0xf]
      %v554 = vld [vmem:[%s1 + $0x84] sm:$0xf]
      %v555 = vld [vmem:[%s1 + $0x88] sm:$0xf]
      %v556 = vld [vmem:[%s1 + $0x8c] sm:$0xf]
      %v557 = vld [vmem:[%s1 + $0x90] sm:$0xf]
      %v558 = vld [vmem:[%s1 + $0x94] sm:$0xf]
      %v559 = vld [vmem:[%s1 + $0x98] sm:$0xf]
      %v560 = vld [vmem:[%s1 + $0x9c] sm:$0xf]
      %v561 = vld [vmem:[%s1 + $0xa0] sm:$0xf]
      %v562 = vld [vmem:[%s1 + $0xa4] sm:$0xf]
      %v563 = vld [vmem:[%s1 + $0xa8] sm:$0xf]
      %v564 = vld [vmem:[%s1 + $0xac] sm:$0xf]
      %v565 = vld [vmem:[%s1 + $0xb0] sm:$0xf]
      %v566 = vld [vmem:[%s1 + $0xb4] sm:$0xf]
      %v567 = vld [vmem:[%s1 + $0xb8] sm:$0xf]
      %v568 = vld [vmem:[%s1 + $0xbc] sm:$0xf]
      %v569 = vld [vmem:[%s1 + $0xc0] sm:$0xf]
      %v570 = vld [vmem:[%s1 + $0xc4] sm:$0xf]
      %v571 = vld [vmem:[%s1 + $0xc8] sm:$0xf]
      %v572 = vld [vmem:[%s1 + $0xcc] sm:$0xf]
      %v573 = vld [vmem:[%s1 + $0xd0] sm:$0xf]
      %v574 = vld [vmem:[%s1 + $0xd4] sm:$0xf]
      %v575 = vld [vmem:[%s1 + $0xd8] sm:$0xf]
      %v576 = vld [vmem:[%s1 + $0xdc] sm:$0xf]
      %v577 = vld [vmem:[%s1 + $0xe0] sm:$0xf]
      %v578 = vld [vmem:[%s1 + $0xe4] sm:$0xf]
      %v579 = vld [vmem:[%s1 + $0xe8] sm:$0xf]
      %v580 = vld [vmem:[%s1 + $0xec] sm:$0xf]
      %v581 = vld [vmem:[%s1 + $0xf0] sm:$0xf]
      %v582 = vld [vmem:[%s1 + $0xf4] sm:$0xf]
      %v583 = vld [vmem:[%s1 + $0xf8] sm:$0xf]
      %v584 = vld [vmem:[%s1 + $0xfc] sm:$0xf]
      %v585 = vld [vmem:[%s1 + $0x100] sm:$0xf]
      %v586 = vld [vmem:[%s1 + $0x104] sm:$0xf]
      %v587 = vld [vmem:[%s1 + $0x108] sm:$0xf]
      %v588 = vld [vmem:[%s1 + $0x10c] sm:$0xf]
      %v589 = vld [vmem:[%s1 + $0x110] sm:$0xf]
      %v590 = vld [vmem:[%s1 + $0x114] sm:$0xf]
      %v591 = vld [vmem:[%s1 + $0x118] sm:$0xf]
      %v592 = vld [vmem:[%s1 + $0x11c] sm:$0xf]
      %v593 = vld [vmem:[%s1 + $0x120] sm:$0xf]
      %v594 = vld [vmem:[%s1 + $0x124] sm:$0xf]
      %v595 = vld [vmem:[%s1 + $0x128] sm:$0xf]
      %v596 = vld [vmem:[%s1 + $0x12c] sm:$0xf]
      %v597 = vld [vmem:[%s1 + $0x130] sm:$0xf]
      %v598 = vld [vmem:[%s1 + $0x134] sm:$0xf]
      %v599 = vld [vmem:[%s1 + $0x138] sm:$0xf]
      %v600 = vld [vmem:[%s1 + $0x13c] sm:$0xf]
      %v601 = vld [vmem:[%s1 + $0x140] sm:$0xf]
      %v602 = vld [vmem:[%s1 + $0x144] sm:$0xf]
      %v603 = vld [vmem:[%s1 + $0x148] sm:$0xf]
      %v604 = vld [vmem:[%s1 + $0x14c] sm:$0xf]
      %v605 = vld [vmem:[%s1 + $0x150] sm:$0xf]
      %v606 = vld [vmem:[%s1 + $0x154] sm:$0xf]
      %v607 = vld [vmem:[%s1 + $0x158] sm:$0xf]
      %v608 = vld [vmem:[%s1 + $0x15c] sm:$0xf]
      %v609 = vld [vmem:[%s1 + $0x160] sm:$0xf]
      %v610 = vld [vmem:[%s1 + $0x164] sm:$0xf]
      %v611 = vld [vmem:[%s1 + $0x168] sm:$0xf]
      %v612 = vld [vmem:[%s1 + $0x16c] sm:$0xf]
      %v613 = vld [vmem:[%s1 + $0x170] sm:$0xf]
      %v614 = vld [vmem:[%s1 + $0x174] sm:$0xf]
      %v615 = vld [vmem:[%s1 + $0x178] sm:$0xf]
      %v616 = vld [vmem:[%s1 + $0x17c] sm:$0xf]
      %v617 = vld [vmem:[%s1 + $0x180] sm:$0xf]
      %v618 = vld [vmem:[%s1 + $0x184] sm:$0xf]
      %v619 = vld [vmem:[%s1 + $0x188] sm:$0xf]
      %v620 = vld [vmem:[%s1 + $0x18c] sm:$0xf]
      %v621 = vld [vmem:[%s1 + $0x190] sm:$0xf]
      %v622 = vld [vmem:[%s1 + $0x194] sm:$0xf]
      %v623 = vld [vmem:[%s1 + $0x198] sm:$0xf]
      %v624 = vld [vmem:[%s1 + $0x19c] sm:$0xf]
      %v625 = vld [vmem:[%s1 + $0x1a0] sm:$0xf]
      %v626 = vld [vmem:[%s1 + $0x1a4] sm:$0xf]
      %v627 = vld [vmem:[%s1 + $0x1a8] sm:$0xf]
      %v628 = vld [vmem:[%s1 + $0x1ac] sm:$0xf]
      %v629 = vld [vmem:[%s1 + $0x1b0] sm:$0xf]
      %v630 = vld [vmem:[%s1 + $0x1b4] sm:$0xf]
      %v631 = vld [vmem:[%s1 + $0x1b8] sm:$0xf]
      %v632 = vld [vmem:[%s1 + $0x1bc] sm:$0xf]
      %v633 = vld [vmem:[%s1 + $0x1c0] sm:$0xf]
      %v634 = vld [vmem:[%s1 + $0x1c4] sm:$0xf]
      %v635 = vld [vmem:[%s1 + $0x1c8] sm:$0xf]
      %v636 = vld [vmem:[%s1 + $0x1cc] sm:$0xf]
      %v637 = vld [vmem:[%s1 + $0x1d0] sm:$0xf]
      %v638 = vld [vmem:[%s1 + $0x1d4] sm:$0xf]
      %v639 = vld [vmem:[%s1 + $0x1d8] sm:$0xf]
      %v640 = vld [vmem:[%s1 + $0x1dc] sm:$0xf]
      %v641 = vld [vmem:[%s1 + $0x1e0] sm:$0xf]
      %v642 = vld [vmem:[%s1 + $0x1e4] sm:$0xf]
      %v643 = vld [vmem:[%s1 + $0x1e8] sm:$0xf]
      %v644 = vld [vmem:[%s1 + $0x1ec] sm:$0xf]
      %v645 = vld [vmem:[%s1 + $0x1f0] sm:$0xf]
      %v646 = vld [vmem:[%s1 + $0x1f4] sm:$0xf]
      %v647 = vld [vmem:[%s1 + $0x1f8] sm:$0xf]
      %v648 = vld [vmem:[%s1 + $0x1fc] sm:$0xf]
      %v649 = vld [vmem:[%s1 + $0x200] sm:$0xf]
      %v650 = vld [vmem:[%s1 + $0x204] sm:$0xf]
      %v651 = vld [vmem:[%s1 + $0x208] sm:$0xf]
      %v652 = vld [vmem:[%s1 + $0x20c] sm:$0xf]
      %v653 = vld [vmem:[%s1 + $0x210] sm:$0xf]
      %v654 = vld [vmem:[%s1 + $0x214] sm:$0xf]
      %v655 = vld [vmem:[%s1 + $0x218] sm:$0xf]
      %v656 = vld [vmem:[%s1 + $0x21c] sm:$0xf]
      %v657 = vld [vmem:[%s1 + $0x220] sm:$0xf]
      %v658 = vld [vmem:[%s1 + $0x224] sm:$0xf]
      %v659 = vld [vmem:[%s1 + $0x228] sm:$0xf]
      %v660 = vld [vmem:[%s1 + $0x22c] sm:$0xf]
      %v661 = vld [vmem:[%s1 + $0x230] sm:$0xf]
      %v662 = vld [vmem:[%s1 + $0x234] sm:$0xf]
      %v663 = vld [vmem:[%s1 + $0x238] sm:$0xf]
      %v664 = vld [vmem:[%s1 + $0x23c] sm:$0xf]
      %v809 = vunpack.c.l.b16 %v521
      %v810 = vunpack.c.l.b16 %v522
      %v811 = vunpack.c.l.b16 %v523
      %v812 = vunpack.c.l.b16 %v524
      %v813 = vunpack.c.l.b16 %v525
      %v814 = vunpack.c.l.b16 %v526
      %v815 = vunpack.c.l.b16 %v527
      %v816 = vunpack.c.l.b16 %v528
      %v817 = vunpack.c.l.b16 %v529
      %v818 = vunpack.c.l.b16 %v530
      %v819 = vunpack.c.l.b16 %v531
      %v820 = vunpack.c.l.b16 %v532
      %v821 = vunpack.c.l.b16 %v533
      %v822 = vunpack.c.l.b16 %v534
      %v823 = vunpack.c.l.b16 %v535
      %v824 = vunpack.c.l.b16 %v536
      %v825 = vunpack.c.l.b16 %v537
      %v826 = vunpack.c.l.b16 %v538
      %v827 = vunpack.c.l.b16 %v539
      %v828 = vunpack.c.l.b16 %v540
      %v829 = vunpack.c.l.b16 %v541
      %v830 = vunpack.c.l.b16 %v542
      %v831 = vunpack.c.l.b16 %v543
      %v832 = vunpack.c.l.b16 %v544
      %v833 = vunpack.c.l.b16 %v545
      %v834 = vunpack.c.l.b16 %v546
      %v835 = vunpack.c.l.b16 %v547
      %v836 = vunpack.c.l.b16 %v548
      %v837 = vunpack.c.l.b16 %v549
      %v838 = vunpack.c.l.b16 %v550
      %v839 = vunpack.c.l.b16 %v551
      %v840 = vunpack.c.l.b16 %v552
      %v841 = vunpack.c.l.b16 %v553
      %v842 = vunpack.c.l.b16 %v554
      %v843 = vunpack.c.l.b16 %v555
      %v844 = vunpack.c.l.b16 %v556
      %v845 = vunpack.c.l.b16 %v557
      %v846 = vunpack.c.l.b16 %v558
      %v847 = vunpack.c.l.b16 %v559
      %v848 = vunpack.c.l.b16 %v560
      %v849 = vunpack.c.l.b16 %v561
      %v850 = vunpack.c.l.b16 %v562
      %v851 = vunpack.c.l.b16 %v563
      %v852 = vunpack.c.l.b16 %v564
      %v853 = vunpack.c.l.b16 %v565
      %v854 = vunpack.c.l.b16 %v566
      %v855 = vunpack.c.l.b16 %v567
      %v856 = vunpack.c.l.b16 %v568
      %v857 = vunpack.c.l.b16 %v569
      %v858 = vunpack.c.l.b16 %v570
      %v859 = vunpack.c.l.b16 %v571
      %v860 = vunpack.c.l.b16 %v572
      %v861 = vunpack.c.l.b16 %v573
      %v862 = vunpack.c.l.b16 %v574
      %v863 = vunpack.c.l.b16 %v575
      %v864 = vunpack.c.l.b16 %v576
      %v865 = vunpack.c.l.b16 %v577
      %v866 = vunpack.c.l.b16 %v578
      %v867 = vunpack.c.l.b16 %v579
      %v868 = vunpack.c.l.b16 %v580
      %v869 = vunpack.c.l.b16 %v581
      %v870 = vunpack.c.l.b16 %v582
      %v871 = vunpack.c.l.b16 %v583
      %v872 = vunpack.c.l.b16 %v584
      %v873 = vunpack.c.l.b16 %v585
      %v874 = vunpack.c.l.b16 %v586
      %v875 = vunpack.c.l.b16 %v587
      %v876 = vunpack.c.l.b16 %v588
      %v877 = vunpack.c.l.b16 %v589
      %v878 = vunpack.c.l.b16 %v590
      %v879 = vunpack.c.l.b16 %v591
      %v880 = vunpack.c.l.b16 %v592
      %v881 = vunpack.c.l.b16 %v593
      %v882 = vunpack.c.l.b16 %v594
      %v883 = vunpack.c.l.b16 %v595
      %v884 = vunpack.c.l.b16 %v596
      %v885 = vunpack.c.l.b16 %v597
      %v886 = vunpack.c.l.b16 %v598
      %v887 = vunpack.c.l.b16 %v599
      %v888 = vunpack.c.l.b16 %v600
      %v889 = vunpack.c.l.b16 %v601
      %v890 = vunpack.c.l.b16 %v602
      %v891 = vunpack.c.l.b16 %v603
      %v892 = vunpack.c.l.b16 %v604
      %v893 = vunpack.c.l.b16 %v605
      %v894 = vunpack.c.l.b16 %v606
      %v895 = vunpack.c.l.b16 %v607
      %v896 = vunpack.c.l.b16 %v608
      %v897 = vunpack.c.l.b16 %v609
      %v898 = vunpack.c.l.b16 %v610
      %v899 = vunpack.c.l.b16 %v611
      %v900 = vunpack.c.l.b16 %v612
      %v901 = vunpack.c.l.b16 %v613
      %v902 = vunpack.c.l.b16 %v614
      %v903 = vunpack.c.l.b16 %v615
      %v904 = vunpack.c.l.b16 %v616
      %v905 = vunpack.c.l.b16 %v617
      %v906 = vunpack.c.l.b16 %v618
      %v907 = vunpack.c.l.b16 %v619
      %v908 = vunpack.c.l.b16 %v620
      %v909 = vunpack.c.l.b16 %v621
      %v910 = vunpack.c.l.b16 %v622
      %v911 = vunpack.c.l.b16 %v623
      %v912 = vunpack.c.l.b16 %v624
      %v913 = vunpack.c.l.b16 %v625
      %v914 = vunpack.c.l.b16 %v626
      %v915 = vunpack.c.l.b16 %v627
      %v916 = vunpack.c.l.b16 %v628
      %v917 = vunpack.c.l.b16 %v629
      %v918 = vunpack.c.l.b16 %v630
      %v919 = vunpack.c.l.b16 %v631
      %v920 = vunpack.c.l.b16 %v632
      %v921 = vunpack.c.l.b16 %v633
      %v922 = vunpack.c.l.b16 %v634
      %v923 = vunpack.c.l.b16 %v635
      %v924 = vunpack.c.l.b16 %v636
      %v925 = vunpack.c.l.b16 %v637
      %v926 = vunpack.c.l.b16 %v638
      %v927 = vunpack.c.l.b16 %v639
      %v928 = vunpack.c.l.b16 %v640
      %v929 = vunpack.c.l.b16 %v641
      %v930 = vunpack.c.l.b16 %v642
      %v931 = vunpack.c.l.b16 %v643
      %v932 = vunpack.c.l.b16 %v644
      %v933 = vunpack.c.l.b16 %v645
      %v934 = vunpack.c.l.b16 %v646
      %v935 = vunpack.c.l.b16 %v647
      %v936 = vunpack.c.l.b16 %v648
      %v937 = vunpack.c.l.b16 %v649
      %v938 = vunpack.c.l.b16 %v650
      %v939 = vunpack.c.l.b16 %v651
      %v940 = vunpack.c.l.b16 %v652
      %v941 = vunpack.c.l.b16 %v653
      %v942 = vunpack.c.l.b16 %v654
      %v943 = vunpack.c.l.b16 %v655
      %v944 = vunpack.c.l.b16 %v656
      %v945 = vunpack.c.l.b16 %v657
      %v946 = vunpack.c.l.b16 %v658
      %v947 = vunpack.c.l.b16 %v659
      %v948 = vunpack.c.l.b16 %v660
      %v949 = vunpack.c.l.b16 %v661
      %v950 = vunpack.c.l.b16 %v662
      %v951 = vunpack.c.l.b16 %v663
      %v952 = vunpack.c.l.b16 %v664
      %v953 = vpack.c.b16 %v810, %v809
      %v954 = vpack.c.b16 %v812, %v811
      %v955 = vpack.c.b16 %v814, %v813
      %v956 = vpack.c.b16 %v816, %v815
      %v957 = vpack.c.b16 %v818, %v817
      %v958 = vpack.c.b16 %v820, %v819
      %v959 = vpack.c.b16 %v822, %v821
      %v960 = vpack.c.b16 %v824, %v823
      %v961 = vpack.c.b16 %v826, %v825
      %v962 = vpack.c.b16 %v828, %v827
      %v963 = vpack.c.b16 %v830, %v829
      %v964 = vpack.c.b16 %v832, %v831
      %v965 = vpack.c.b16 %v834, %v833
      %v966 = vpack.c.b16 %v836, %v835
      %v967 = vpack.c.b16 %v838, %v837
      %v968 = vpack.c.b16 %v840, %v839
      %v969 = vpack.c.b16 %v842, %v841
      %v970 = vpack.c.b16 %v844, %v843
      %v971 = vpack.c.b16 %v846, %v845
      %v972 = vpack.c.b16 %v848, %v847
      %v973 = vpack.c.b16 %v850, %v849
      %v974 = vpack.c.b16 %v852, %v851
      %v975 = vpack.c.b16 %v854, %v853
      %v976 = vpack.c.b16 %v856, %v855
      %v977 = vpack.c.b16 %v858, %v857
      %v978 = vpack.c.b16 %v860, %v859
      %v979 = vpack.c.b16 %v862, %v861
      %v980 = vpack.c.b16 %v864, %v863
      %v981 = vpack.c.b16 %v866, %v865
      %v982 = vpack.c.b16 %v868, %v867
      %v983 = vpack.c.b16 %v870, %v869
      %v984 = vpack.c.b16 %v872, %v871
      %v985 = vpack.c.b16 %v874, %v873
      %v986 = vpack.c.b16 %v876, %v875
      %v987 = vpack.c.b16 %v878, %v877
      %v988 = vpack.c.b16 %v880, %v879
      %v989 = vpack.c.b16 %v882, %v881
      %v990 = vpack.c.b16 %v884, %v883
      %v991 = vpack.c.b16 %v886, %v885
      %v992 = vpack.c.b16 %v888, %v887
      %v993 = vpack.c.b16 %v890, %v889
      %v994 = vpack.c.b16 %v892, %v891
      %v995 = vpack.c.b16 %v894, %v893
      %v996 = vpack.c.b16 %v896, %v895
      %v997 = vpack.c.b16 %v898, %v897
      %v998 = vpack.c.b16 %v900, %v899
      %v999 = vpack.c.b16 %v902, %v901
      %v1000 = vpack.c.b16 %v904, %v903
      %v1001 = vpack.c.b16 %v906, %v905
      %v1002 = vpack.c.b16 %v908, %v907
      %v1003 = vpack.c.b16 %v910, %v909
      %v1004 = vpack.c.b16 %v912, %v911
      %v1005 = vpack.c.b16 %v914, %v913
      %v1006 = vpack.c.b16 %v916, %v915
      %v1007 = vpack.c.b16 %v918, %v917
      %v1008 = vpack.c.b16 %v920, %v919
      %v1009 = vpack.c.b16 %v922, %v921
      %v1010 = vpack.c.b16 %v924, %v923
      %v1011 = vpack.c.b16 %v926, %v925
      %v1012 = vpack.c.b16 %v928, %v927
      %v1013 = vpack.c.b16 %v930, %v929
      %v1014 = vpack.c.b16 %v932, %v931
      %v1015 = vpack.c.b16 %v934, %v933
      %v1016 = vpack.c.b16 %v936, %v935
      %v1017 = vpack.c.b16 %v938, %v937
      %v1018 = vpack.c.b16 %v940, %v939
      %v1019 = vpack.c.b16 %v942, %v941
      %v1020 = vpack.c.b16 %v944, %v943
      %v1021 = vpack.c.b16 %v946, %v945
      %v1022 = vpack.c.b16 %v948, %v947
      %v1023 = vpack.c.b16 %v950, %v949
      %v1024 = vpack.c.b16 %v952, %v951
      %1097 = vmatprep.subr.bf16.mxu0 0
      %1098 = vmatpush1.bf16.msra.mxu0 %v960
      %1099 = vmatprep.subr.bf16.mxu0 0
      %1100 = vmatpush1.bf16.msra.mxu0 %v959
      %1101 = vmatprep.subr.bf16.mxu0 0
      %1102 = vmatpush1.bf16.msra.mxu0 %v958
      %1103 = vmatprep.subr.bf16.mxu0 0
      %1104 = vmatpush1.bf16.msra.mxu0 %v957
      %1105 = vmatprep.subr.bf16.mxu0 0
      %1106 = vmatpush1.bf16.msra.mxu0 %v956
      %1107 = vmatprep.subr.bf16.mxu0 0
      %1108 = vmatpush1.bf16.msra.mxu0 %v955
      %1109 = vmatprep.subr.bf16.mxu0 0
      %1110 = vmatpush1.bf16.msra.mxu0 %v954
      %1111 = vmatprep.subr.bf16.mxu0 0
      %1112 = vmatpush1.bf16.msra.mxu0 %v953
      %1113 = vmatprep.subr.bf16.mxu0 0
      %1114 = vmatpush2.bf16.msra.mxu0 %v968
      %1115 = vmatprep.subr.bf16.mxu0 0
      %1116 = vmatpush2.bf16.msra.mxu0 %v967
      %1117 = vmatprep.subr.bf16.mxu0 0
      %1118 = vmatpush2.bf16.msra.mxu0 %v966
      %1119 = vmatprep.subr.bf16.mxu0 0
      %1120 = vmatpush2.bf16.msra.mxu0 %v965
      %1121 = vmatprep.subr.bf16.mxu0 0
      %1122 = vmatpush2.bf16.msra.mxu0 %v964
      %1123 = vmatprep.subr.bf16.mxu0 0
      %1124 = vmatpush2.bf16.msra.mxu0 %v963
      %1125 = vmatprep.subr.bf16.mxu0 0
      %1126 = vmatpush2.bf16.msra.mxu0 %v962
      %1127 = vmatprep.subr.bf16.mxu0 0
      %1128 = vmatpush2.bf16.msra.mxu0 %v961
      %1129 = vmatprep.mubr.bf16.mxu0 %v343
      %1130 = vmatmul.mubr.bf16.gmra.mxu0 %v291
      %v1131 = vpop.f32.mrf.mxu0
      %v1132 = vadd.f32 0.0, %v1131
      %v1133 = vpop.f32.mrf.mxu0
      %v1134 = vpop.f32.mrf.mxu0
      %v1135 = vadd.f32 0.0, %v1134
      %v1136 = vpop.f32.mrf.mxu0
      %1137 = vmatprep.mubr.bf16.mxu0 %v355
      %1138 = vmatmul.mubr.bf16.gmra.mxu0 %v292
      %v1139 = vpop.f32.mrf.mxu0
      %v1140 = vadd.f32 0.0, %v1139
      %v1141 = vpop.f32.mrf.mxu0
      %v1142 = vpop.f32.mrf.mxu0
      %v1143 = vadd.f32 0.0, %v1142
      %v1144 = vpop.f32.mrf.mxu0
      %1145 = vmatprep.mubr.bf16.mxu0 %v367
      %1146 = vmatmul.mubr.bf16.gmra.mxu0 %v293
      %v1147 = vpop.f32.mrf.mxu0
      %v1148 = vadd.f32 0.0, %v1147
      %v1149 = vpop.f32.mrf.mxu0
      %v1150 = vpop.f32.mrf.mxu0
      %v1151 = vadd.f32 0.0, %v1150
      %v1152 = vpop.f32.mrf.mxu0
      %1153 = vmatprep.mubr.bf16.mxu0 %v379
      %1154 = vmatmul.mubr.bf16.gmra.mxu0 %v294
      %v1155 = vpop.f32.mrf.mxu0
      %v1156 = vadd.f32 0.0, %v1155
      %v1157 = vpop.f32.mrf.mxu0
      %v1158 = vpop.f32.mrf.mxu0
      %v1159 = vadd.f32 0.0, %v1158
      %v1160 = vpop.f32.mrf.mxu0
      %1161 = vmatprep.mubr.bf16.mxu0 %v391
      %1162 = vmatmul.mubr.bf16.gmra.mxu0 %v295
      %v1163 = vpop.f32.mrf.mxu0
      %v1164 = vadd.f32 0.0, %v1163
      %v1165 = vpop.f32.mrf.mxu0
      %v1166 = vpop.f32.mrf.mxu0
      %v1167 = vadd.f32 0.0, %v1166
      %v1168 = vpop.f32.mrf.mxu0
      %1169 = vmatprep.mubr.bf16.mxu0 %v403
      %1170 = vmatmul.mubr.bf16.gmra.mxu0 %v296
      %v1171 = vpop.f32.mrf.mxu0
      %v1172 = vadd.f32 0.0, %v1171
      %v1173 = vpop.f32.mrf.mxu0
      %v1174 = vpop.f32.mrf.mxu0
      %v1175 = vadd.f32 0.0, %v1174
      %v1176 = vpop.f32.mrf.mxu0
      %1177 = vmatprep.mubr.bf16.mxu0 %v415
      %1178 = vmatmul.mubr.bf16.gmra.mxu0 %v297
      %v1179 = vpop.f32.mrf.mxu0
      %v1180 = vadd.f32 0.0, %v1179
      %v1181 = vpop.f32.mrf.mxu0
      %v1182 = vpop.f32.mrf.mxu0
      %v1183 = vadd.f32 0.0, %v1182
      %v1184 = vpop.f32.mrf.mxu0
      %1185 = vmatprep.mubr.bf16.mxu0 %v427
      %1186 = vmatmul.mubr.bf16.gmra.mxu0 %v298
      %v1187 = vpop.f32.mrf.mxu0
      %v1188 = vadd.f32 0.0, %v1187
      %v1189 = vpop.f32.mrf.mxu0
      %v1190 = vpop.f32.mrf.mxu0
      %v1191 = vadd.f32 0.0, %v1190
      %v1192 = vpop.f32.mrf.mxu0
      %1193 = vdwg.mxu0
      %1194 = vmatprep.subr.bf16.mxu0 0
      %1195 = vmatpush1.bf16.msra.mxu0 %v976
      %1196 = vmatprep.subr.bf16.mxu0 0
      %1197 = vmatpush1.bf16.msra.mxu0 %v975
      %1198 = vmatprep.subr.bf16.mxu0 0
      %1199 = vmatpush1.bf16.msra.mxu0 %v974
      %1200 = vmatprep.subr.bf16.mxu0 0
      %1201 = vmatpush1.bf16.msra.mxu0 %v973
      %1202 = vmatprep.subr.bf16.mxu0 0
      %1203 = vmatpush1.bf16.msra.mxu0 %v972
      %1204 = vmatprep.subr.bf16.mxu0 0
      %1205 = vmatpush1.bf16.msra.mxu0 %v971
      %1206 = vmatprep.subr.bf16.mxu0 0
      %1207 = vmatpush1.bf16.msra.mxu0 %v970
      %1208 = vmatprep.subr.bf16.mxu0 0
      %1209 = vmatpush1.bf16.msra.mxu0 %v969
      %1210 = vmatprep.subr.bf16.mxu0 0
      %1211 = vmatpush2.bf16.msra.mxu0 %v984
      %1212 = vmatprep.subr.bf16.mxu0 0
      %1213 = vmatpush2.bf16.msra.mxu0 %v983
      %1214 = vmatprep.subr.bf16.mxu0 0
      %1215 = vmatpush2.bf16.msra.mxu0 %v982
      %1216 = vmatprep.subr.bf16.mxu0 0
      %1217 = vmatpush2.bf16.msra.mxu0 %v981
      %1218 = vmatprep.subr.bf16.mxu0 0
      %1219 = vmatpush2.bf16.msra.mxu0 %v980
      %1220 = vmatprep.subr.bf16.mxu0 0
      %1221 = vmatpush2.bf16.msra.mxu0 %v979
      %1222 = vmatprep.subr.bf16.mxu0 0
      %1223 = vmatpush2.bf16.msra.mxu0 %v978
      %1224 = vmatprep.subr.bf16.mxu0 0
      %1225 = vmatpush2.bf16.msra.mxu0 %v977
      %1226 = vmatprep.mubr.bf16.mxu0 %v292
      %1227 = vmatmul.mubr.bf16.gmra.mxu0 %v439
      %v1228 = vpop.f32.mrf.mxu0
      %v1229 = vadd.f32 %v1132, %v1228
      %v1230 = vpop.f32.mrf.mxu0
      %v1231 = vpop.f32.mrf.mxu0
      %v1232 = vadd.f32 %v1135, %v1231
      %v1233 = vpop.f32.mrf.mxu0
      %1234 = vmatprep.mubr.bf16.mxu0 %v293
      %1235 = vmatmul.mubr.bf16.gmra.mxu0 %v442
      %v1236 = vpop.f32.mrf.mxu0
      %v1237 = vadd.f32 %v1140, %v1236
      %v1238 = vpop.f32.mrf.mxu0
      %v1239 = vpop.f32.mrf.mxu0
      %v1240 = vadd.f32 %v1143, %v1239
      %v1241 = vpop.f32.mrf.mxu0
      %1242 = vmatprep.mubr.bf16.mxu0 %v294
      %1243 = vmatmul.mubr.bf16.gmra.mxu0 %v445
      %v1244 = vpop.f32.mrf.mxu0
      %v1245 = vadd.f32 %v1148, %v1244
      %v1246 = vpop.f32.mrf.mxu0
      %v1247 = vpop.f32.mrf.mxu0
      %v1248 = vadd.f32 %v1151, %v1247
      %v1249 = vpop.f32.mrf.mxu0
      %1250 = vmatprep.mubr.bf16.mxu0 %v295
      %1251 = vmatmul.mubr.bf16.gmra.mxu0 %v448
      %v1252 = vpop.f32.mrf.mxu0
      %v1253 = vadd.f32 %v1156, %v1252
      %v1254 = vpop.f32.mrf.mxu0
      %v1255 = vpop.f32.mrf.mxu0
      %v1256 = vadd.f32 %v1159, %v1255
      %v1257 = vpop.f32.mrf.mxu0
      %1258 = vmatprep.mubr.bf16.mxu0 %v296
      %1259 = vmatmul.mubr.bf16.gmra.mxu0 %v451
      %v1260 = vpop.f32.mrf.mxu0
      %v1261 = vadd.f32 %v1164, %v1260
      %v1262 = vpop.f32.mrf.mxu0
      %v1263 = vpop.f32.mrf.mxu0
      %v1264 = vadd.f32 %v1167, %v1263
      %v1265 = vpop.f32.mrf.mxu0
      %1266 = vmatprep.mubr.bf16.mxu0 %v297
      %1267 = vmatmul.mubr.bf16.gmra.mxu0 %v454
      %v1268 = vpop.f32.mrf.mxu0
      %v1269 = vadd.f32 %v1172, %v1268
      %v1270 = vpop.f32.mrf.mxu0
      %v1271 = vpop.f32.mrf.mxu0
      %v1272 = vadd.f32 %v1175, %v1271
      %v1273 = vpop.f32.mrf.mxu0
      %1274 = vmatprep.mubr.bf16.mxu0 %v298
      %1275 = vmatmul.mubr.bf16.gmra.mxu0 %v457
      %v1276 = vpop.f32.mrf.mxu0
      %v1277 = vadd.f32 %v1180, %v1276
      %v1278 = vpop.f32.mrf.mxu0
      %v1279 = vpop.f32.mrf.mxu0
      %v1280 = vadd.f32 %v1183, %v1279
      %v1281 = vpop.f32.mrf.mxu0
      %1282 = vmatprep.mubr.bf16.mxu0 %v473
      %1283 = vmatmul.mubr.bf16.gmra.mxu0 %v460
      %v1284 = vpop.f32.mrf.mxu0
      %v1285 = vadd.f32 %v1188, %v1284
      %v1286 = vpop.f32.mrf.mxu0
      %v1287 = vpop.f32.mrf.mxu0
      %v1288 = vadd.f32 %v1191, %v1287
      %v1289 = vpop.f32.mrf.mxu0
      %1290 = vdwg.mxu0
      %1291 = vmatprep.subr.bf16.mxu0 0
      %1292 = vmatpush1.bf16.msra.mxu0 %v992
      %1293 = vmatprep.subr.bf16.mxu0 0
      %1294 = vmatpush1.bf16.msra.mxu0 %v991
      %1295 = vmatprep.subr.bf16.mxu0 0
      %1296 = vmatpush1.bf16.msra.mxu0 %v990
      %1297 = vmatprep.subr.bf16.mxu0 0
      %1298 = vmatpush1.bf16.msra.mxu0 %v989
      %1299 = vmatprep.subr.bf16.mxu0 0
      %1300 = vmatpush1.bf16.msra.mxu0 %v988
      %1301 = vmatprep.subr.bf16.mxu0 0
      %1302 = vmatpush1.bf16.msra.mxu0 %v987
      %1303 = vmatprep.subr.bf16.mxu0 0
      %1304 = vmatpush1.bf16.msra.mxu0 %v986
      %1305 = vmatprep.subr.bf16.mxu0 0
      %1306 = vmatpush1.bf16.msra.mxu0 %v985
      %1307 = vmatprep.subr.bf16.mxu0 0
      %1308 = vmatpush2.bf16.msra.mxu0 %v1000
      %1309 = vmatprep.subr.bf16.mxu0 0
      %1310 = vmatpush2.bf16.msra.mxu0 %v999
      %1311 = vmatprep.subr.bf16.mxu0 0
      %1312 = vmatpush2.bf16.msra.mxu0 %v998
      %1313 = vmatprep.subr.bf16.mxu0 0
      %1314 = vmatpush2.bf16.msra.mxu0 %v997
      %1315 = vmatprep.subr.bf16.mxu0 0
      %1316 = vmatpush2.bf16.msra.mxu0 %v996
      %1317 = vmatprep.subr.bf16.mxu0 0
      %1318 = vmatpush2.bf16.msra.mxu0 %v995
      %1319 = vmatprep.subr.bf16.mxu0 0
      %1320 = vmatpush2.bf16.msra.mxu0 %v994
      %1321 = vmatprep.subr.bf16.mxu0 0
      %1322 = vmatpush2.bf16.msra.mxu0 %v993
      %1323 = vmatprep.mubr.bf16.mxu0 %v442
      %1324 = vmatmul.mubr.bf16.gmra.mxu0 %v355
      %v1325 = vpop.f32.mrf.mxu0
      %v1326 = vadd.f32 %v1229, %v1325
      %v1327 = vpop.f32.mrf.mxu0
      %v1328 = vpop.f32.mrf.mxu0
      %v1329 = vadd.f32 %v1232, %v1328
      %v1330 = vpop.f32.mrf.mxu0
      %1331 = vmatprep.mubr.bf16.mxu0 %v445
      %1332 = vmatmul.mubr.bf16.gmra.mxu0 %v367
      %v1333 = vpop.f32.mrf.mxu0
      %v1334 = vadd.f32 %v1237, %v1333
      %v1335 = vpop.f32.mrf.mxu0
      %v1336 = vpop.f32.mrf.mxu0
      %v1337 = vadd.f32 %v1240, %v1336
      %v1338 = vpop.f32.mrf.mxu0
      %1339 = vmatprep.mubr.bf16.mxu0 %v448
      %1340 = vmatmul.mubr.bf16.gmra.mxu0 %v379
      %v1341 = vpop.f32.mrf.mxu0
      %v1342 = vadd.f32 %v1245, %v1341
      %v1343 = vpop.f32.mrf.mxu0
      %v1344 = vpop.f32.mrf.mxu0
      %v1345 = vadd.f32 %v1248, %v1344
      %v1346 = vpop.f32.mrf.mxu0
      %1347 = vmatprep.mubr.bf16.mxu0 %v451
      %1348 = vmatmul.mubr.bf16.gmra.mxu0 %v391
      %v1349 = vpop.f32.mrf.mxu0
      %v1350 = vadd.f32 %v1253, %v1349
      %v1351 = vpop.f32.mrf.mxu0
      %v1352 = vpop.f32.mrf.mxu0
      %v1353 = vadd.f32 %v1256, %v1352
      %v1354 = vpop.f32.mrf.mxu0
      %1355 = vmatprep.mubr.bf16.mxu0 %v454
      %1356 = vmatmul.mubr.bf16.gmra.mxu0 %v403
      %v1357 = vpop.f32.mrf.mxu0
      %v1358 = vadd.f32 %v1261, %v1357
      %v1359 = vpop.f32.mrf.mxu0
      %v1360 = vpop.f32.mrf.mxu0
      %v1361 = vadd.f32 %v1264, %v1360
      %v1362 = vpop.f32.mrf.mxu0
      %1363 = vmatprep.mubr.bf16.mxu0 %v457
      %1364 = vmatmul.mubr.bf16.gmra.mxu0 %v415
      %v1365 = vpop.f32.mrf.mxu0
      %v1366 = vadd.f32 %v1269, %v1365
      %v1367 = vpop.f32.mrf.mxu0
      %v1368 = vpop.f32.mrf.mxu0
      %v1369 = vadd.f32 %v1272, %v1368
      %v1370 = vpop.f32.mrf.mxu0
      %1371 = vmatprep.mubr.bf16.mxu0 %v460
      %1372 = vmatmul.mubr.bf16.gmra.mxu0 %v427
      %v1373 = vpop.f32.mrf.mxu0
      %v1374 = vadd.f32 %v1277, %v1373
      %v1375 = vpop.f32.mrf.mxu0
      %v1376 = vpop.f32.mrf.mxu0
      %v1377 = vadd.f32 %v1280, %v1376
      %v1378 = vpop.f32.mrf.mxu0
      %1379 = vmatprep.mubr.bf16.mxu0 %v493
      %1380 = vmatmul.mubr.bf16.gmra.mxu0 %v489
      %v1381 = vpop.f32.mrf.mxu0
      %v1382 = vadd.f32 %v1285, %v1381
      %v1383 = vpop.f32.mrf.mxu0
      %v1384 = vpop.f32.mrf.mxu0
      %v1385 = vadd.f32 %v1288, %v1384
      %v1386 = vpop.f32.mrf.mxu0
      %1387 = vdwg.mxu0
      %1388 = vmatprep.subr.bf16.mxu0 0
      %1389 = vmatpush1.bf16.msra.mxu0 %v1008
      %1390 = vmatprep.subr.bf16.mxu0 0
      %1391 = vmatpush1.bf16.msra.mxu0 %v1007
      %1392 = vmatprep.subr.bf16.mxu0 0
      %1393 = vmatpush1.bf16.msra.mxu0 %v1006
      %1394 = vmatprep.subr.bf16.mxu0 0
      %1395 = vmatpush1.bf16.msra.mxu0 %v1005
      %1396 = vmatprep.subr.bf16.mxu0 0
      %1397 = vmatpush1.bf16.msra.mxu0 %v1004
      %1398 = vmatprep.subr.bf16.mxu0 0
      %1399 = vmatpush1.bf16.msra.mxu0 %v1003
      %1400 = vmatprep.subr.bf16.mxu0 0
      %1401 = vmatpush1.bf16.msra.mxu0 %v1002
      %1402 = vmatprep.subr.bf16.mxu0 0
      %1403 = vmatpush1.bf16.msra.mxu0 %v1001
      %1404 = vmatprep.subr.bf16.mxu0 0
      %1405 = vmatpush2.bf16.msra.mxu0 %v1016
      %1406 = vmatprep.subr.bf16.mxu0 0
      %1407 = vmatpush2.bf16.msra.mxu0 %v1015
      %1408 = vmatprep.subr.bf16.mxu0 0
      %1409 = vmatpush2.bf16.msra.mxu0 %v1014
      %1410 = vmatprep.subr.bf16.mxu0 0
      %1411 = vmatpush2.bf16.msra.mxu0 %v1013
      %1412 = vmatprep.subr.bf16.mxu0 0
      %1413 = vmatpush2.bf16.msra.mxu0 %v1012
      %1414 = vmatprep.subr.bf16.mxu0 0
      %1415 = vmatpush2.bf16.msra.mxu0 %v1011
      %1416 = vmatprep.subr.bf16.mxu0 0
      %1417 = vmatpush2.bf16.msra.mxu0 %v1010
      %1418 = vmatprep.subr.bf16.mxu0 0
      %1419 = vmatpush2.bf16.msra.mxu0 %v1009
      %1420 = vmatprep.mubr.bf16.mxu0 %v367
      %1421 = vmatmul.mubr.bf16.gmra.mxu0 %v293
      %v1422 = vpop.f32.mrf.mxu0
      %v1423 = vadd.f32 %v1326, %v1422
      %v1424 = vpop.f32.mrf.mxu0
      %v1425 = vpop.f32.mrf.mxu0
      %v1426 = vadd.f32 %v1329, %v1425
      %v1427 = vpop.f32.mrf.mxu0
      %1428 = vmatprep.mubr.bf16.mxu0 %v379
      %1429 = vmatmul.mubr.bf16.gmra.mxu0 %v294
      %v1430 = vpop.f32.mrf.mxu0
      %v1431 = vadd.f32 %v1334, %v1430
      %v1432 = vpop.f32.mrf.mxu0
      %v1433 = vpop.f32.mrf.mxu0
      %v1434 = vadd.f32 %v1337, %v1433
      %v1435 = vpop.f32.mrf.mxu0
      %1436 = vmatprep.mubr.bf16.mxu0 %v391
      %1437 = vmatmul.mubr.bf16.gmra.mxu0 %v295
      %v1438 = vpop.f32.mrf.mxu0
      %v1439 = vadd.f32 %v1342, %v1438
      %v1440 = vpop.f32.mrf.mxu0
      %v1441 = vpop.f32.mrf.mxu0
      %v1442 = vadd.f32 %v1345, %v1441
      %v1443 = vpop.f32.mrf.mxu0
      %1444 = vmatprep.mubr.bf16.mxu0 %v403
      %1445 = vmatmul.mubr.bf16.gmra.mxu0 %v296
      %v1446 = vpop.f32.mrf.mxu0
      %v1447 = vadd.f32 %v1350, %v1446
      %v1448 = vpop.f32.mrf.mxu0
      %v1449 = vpop.f32.mrf.mxu0
      %v1450 = vadd.f32 %v1353, %v1449
      %v1451 = vpop.f32.mrf.mxu0
      %1452 = vmatprep.mubr.bf16.mxu0 %v415
      %1453 = vmatmul.mubr.bf16.gmra.mxu0 %v297
      %v1454 = vpop.f32.mrf.mxu0
      %v1455 = vadd.f32 %v1358, %v1454
      %v1456 = vpop.f32.mrf.mxu0
      %v1457 = vpop.f32.mrf.mxu0
      %v1458 = vadd.f32 %v1361, %v1457
      %v1459 = vpop.f32.mrf.mxu0
      %1460 = vmatprep.mubr.bf16.mxu0 %v427
      %1461 = vmatmul.mubr.bf16.gmra.mxu0 %v298
      %v1462 = vpop.f32.mrf.mxu0
      %v1463 = vadd.f32 %v1366, %v1462
      %v1464 = vpop.f32.mrf.mxu0
      %v1465 = vpop.f32.mrf.mxu0
      %v1466 = vadd.f32 %v1369, %v1465
      %v1467 = vpop.f32.mrf.mxu0
      %1468 = vmatprep.mubr.bf16.mxu0 %v489
      %1469 = vmatmul.mubr.bf16.gmra.mxu0 %v473
      %v1470 = vpop.f32.mrf.mxu0
      %v1471 = vadd.f32 %v1374, %v1470
      %v1472 = vpop.f32.mrf.mxu0
      %v1473 = vpop.f32.mrf.mxu0
      %v1474 = vadd.f32 %v1377, %v1473
      %v1475 = vpop.f32.mrf.mxu0
      %1476 = vmatprep.mubr.bf16.mxu0 %v515
      %1477 = vmatmul.mubr.bf16.gmra.mxu0 %v499
      %v1478 = vpop.f32.mrf.mxu0
      %v1479 = vadd.f32 %v1382, %v1478
      %v1480 = vpop.f32.mrf.mxu0
      %v1481 = vpop.f32.mrf.mxu0
      %v1482 = vadd.f32 %v1385, %v1481
      %v1483 = vpop.f32.mrf.mxu0
      %1484 = vdwg.mxu0
      %1485 = vmatprep.subr.bf16.mxu0 0
      %1486 = vmatpush1.bf16.msra.mxu0 %v1024
      %1487 = vmatprep.subr.bf16.mxu0 0
      %1488 = vmatpush1.bf16.msra.mxu0 %v1023
      %1489 = vmatprep.subr.bf16.mxu0 0
      %1490 = vmatpush1.bf16.msra.mxu0 %v1022
      %1491 = vmatprep.subr.bf16.mxu0 0
      %1492 = vmatpush1.bf16.msra.mxu0 %v1021
      %1493 = vmatprep.subr.bf16.mxu0 0
      %1494 = vmatpush1.bf16.msra.mxu0 %v1020
      %1495 = vmatprep.subr.bf16.mxu0 0
      %1496 = vmatpush1.bf16.msra.mxu0 %v1019
      %1497 = vmatprep.subr.bf16.mxu0 0
      %1498 = vmatpush1.bf16.msra.mxu0 %v1018
      %1499 = vmatprep.subr.bf16.mxu0 0
      %1500 = vmatpush1.bf16.msra.mxu0 %v1017
      %1501 = vmatprep.subr.bf16.mxu0 0
      %1502 = vmatpush2.bf16.msra.mxu0 0
      %1503 = vmatprep.subr.bf16.mxu0 0
      %1504 = vmatpush2.bf16.msra.mxu0 0
      %1505 = vmatprep.subr.bf16.mxu0 0
      %1506 = vmatpush2.bf16.msra.mxu0 0
      %1507 = vmatprep.subr.bf16.mxu0 0
      %1508 = vmatpush2.bf16.msra.mxu0 0
      %1509 = vmatprep.subr.bf16.mxu0 0
      %1510 = vmatpush2.bf16.msra.mxu0 0
      %1511 = vmatprep.subr.bf16.mxu0 0
      %1512 = vmatpush2.bf16.msra.mxu0 0
      %1513 = vmatprep.subr.bf16.mxu0 0
      %1514 = vmatpush2.bf16.msra.mxu0 0
      %1515 = vmatprep.subr.bf16.mxu0 0
      %1516 = vmatpush2.bf16.msra.mxu0 0
      %1517 = vmatprep.mubr.bf16.mxu0 0
      %1518 = vmatmul.mubr.bf16.gmra.mxu0 %v445
      %v1519 = vpop.f32.mrf.mxu0
      %v1520 = vadd.f32 %v1423, %v1519
      %v1521 = vpop.f32.mrf.mxu0
      %v1522 = vpop.f32.mrf.mxu0
      %v1523 = vadd.f32 %v1426, %v1522
      %v1524 = vpop.f32.mrf.mxu0
      %1525 = vmatprep.mubr.bf16.mxu0 0
      %1526 = vmatmul.mubr.bf16.gmra.mxu0 %v448
      %v1527 = vpop.f32.mrf.mxu0
      %v1528 = vadd.f32 %v1431, %v1527
      %v1529 = vpop.f32.mrf.mxu0
      %v1530 = vpop.f32.mrf.mxu0
      %v1531 = vadd.f32 %v1434, %v1530
      %v1532 = vpop.f32.mrf.mxu0
      %1533 = vmatprep.mubr.bf16.mxu0 0
      %1534 = vmatmul.mubr.bf16.gmra.mxu0 %v451
      %v1535 = vpop.f32.mrf.mxu0
      %v1536 = vadd.f32 %v1439, %v1535
      %v1537 = vpop.f32.mrf.mxu0
      %v1538 = vpop.f32.mrf.mxu0
      %v1539 = vadd.f32 %v1442, %v1538
      %v1540 = vpop.f32.mrf.mxu0
      %1541 = vmatprep.mubr.bf16.mxu0 0
      %1542 = vmatmul.mubr.bf16.gmra.mxu0 %v454
      %v1543 = vpop.f32.mrf.mxu0
      %v1544 = vadd.f32 %v1447, %v1543
      %v1545 = vpop.f32.mrf.mxu0
      %v1546 = vpop.f32.mrf.mxu0
      %v1547 = vadd.f32 %v1450, %v1546
      %v1548 = vpop.f32.mrf.mxu0
      %1549 = vmatprep.mubr.bf16.mxu0 0
      %1550 = vmatmul.mubr.bf16.gmra.mxu0 %v457
      %v1551 = vpop.f32.mrf.mxu0
      %v1552 = vadd.f32 %v1455, %v1551
      %v1553 = vpop.f32.mrf.mxu0
      %v1554 = vpop.f32.mrf.mxu0
      %v1555 = vadd.f32 %v1458, %v1554
      %v1556 = vpop.f32.mrf.mxu0
      %1557 = vmatprep.mubr.bf16.mxu0 0
      %1558 = vmatmul.mubr.bf16.gmra.mxu0 %v460
      %v1559 = vpop.f32.mrf.mxu0
      %v1560 = vadd.f32 %v1463, %v1559
      %v1561 = vpop.f32.mrf.mxu0
      %v1562 = vpop.f32.mrf.mxu0
      %v1563 = vadd.f32 %v1466, %v1562
      %v1564 = vpop.f32.mrf.mxu0
      %1565 = vmatprep.mubr.bf16.mxu0 0
      %1566 = vmatmul.mubr.bf16.gmra.mxu0 %v493
      %v1567 = vpop.f32.mrf.mxu0
      %v1568 = vadd.f32 %v1471, %v1567
      %v1569 = vpop.f32.mrf.mxu0
      %v1570 = vpop.f32.mrf.mxu0
      %v1571 = vadd.f32 %v1474, %v1570
      %v1572 = vpop.f32.mrf.mxu0
      %1573 = vmatprep.mubr.bf16.mxu0 0
      %1574 = vmatmul.mubr.bf16.gmra.mxu0 %v519
      %v1575 = vpop.f32.mrf.mxu0
      %v1576 = vadd.f32 %v1479, %v1575
      %v1577 = vpop.f32.mrf.mxu0
      %v1578 = vpop.f32.mrf.mxu0
      %v1579 = vadd.f32 %v1482, %v1578
      %v1580 = vpop.f32.mrf.mxu0
      %1581 = vdwg.mxu0
      %1582 = vst [vmem:[%s219] sm:$0xff] %v1520
      %1583 = vst [vmem:[%s219 + $0x8] sm:$0xff] %v1523
      %1584 = vst [vmem:[%s219 + $0x10] sm:$0xff] %v1528
      %1585 = vst [vmem:[%s219 + $0x18] sm:$0xff] %v1531
      %1586 = vst [vmem:[%s219 + $0x20] sm:$0xff] %v1536
      %1587 = vst [vmem:[%s219 + $0x28] sm:$0xff] %v1539
      %1588 = vst [vmem:[%s219 + $0x30] sm:$0xff] %v1544
      %1589 = vst [vmem:[%s219 + $0x38] sm:$0xff] %v1547
      %1590 = vst [vmem:[%s219 + $0x40] sm:$0xff] %v1552
      %1591 = vst [vmem:[%s219 + $0x48] sm:$0xff] %v1555
      %1592 = vst [vmem:[%s219 + $0x50] sm:$0xff] %v1560
      %1593 = vst [vmem:[%s219 + $0x58] sm:$0xff] %v1563
      %1594 = vst [vmem:[%s219 + $0x60] sm:$0xff] %v1568
      %1595 = vst [vmem:[%s219 + $0x68] sm:$0xff] %v1571
      %1596 = vst [vmem:[%s219 + $0x70] sm:$0xff] %v1576
      %1597 = vst [vmem:[%s219 + $0x78] sm:$0xff] %v1579
      %v1598 = vadd.f32 %v1520, %v1523
      %v1599 = vadd.f32 %v1598, %v1528
      %v1600 = vadd.f32 %v1599, %v1531
      %v1601 = vadd.f32 %v1600, %v1536
      %v1602 = vadd.f32 %v1601, %v1539
      %v1603 = vadd.f32 %v1602, %v1544
      %v1604 = vadd.f32 %v1603, %v1547
      %v1605 = vadd.f32 %v1604, %v1552
      %v1606 = vadd.f32 %v1605, %v1555
      %v1607 = vadd.f32 %v1606, %v1560
      %v1608 = vadd.f32 %v1607, %v1563
      %v1609 = vadd.f32 %v1608, %v1568
      %v1610 = vadd.f32 %v1609, %v1571
      %v1611 = vadd.f32 %v1610, %v1576
      %v1612 = vadd.f32 %v1611, %v1579
      %v1613 = vrot.slane %v1612, 4
      %v1614 = vadd.f32 %v1612, %v1613
      %v1615 = vrot.slane %v1614, 2
      %v1616 = vadd.f32 %v1614, %v1615
      %v1617 = vrot.slane %v1616, 1
      %v1618 = vadd.f32 %v1616, %v1617
      %v1619 = vmul.f32 %v1520, %v1520
      %v1620 = vmul.f32 %v1523, %v1523
      %v1621 = vmul.f32 %v1528, %v1528
      %v1622 = vmul.f32 %v1531, %v1531
      %v1623 = vmul.f32 %v1536, %v1536
      %v1624 = vmul.f32 %v1539, %v1539
      %v1625 = vmul.f32 %v1544, %v1544
      %v1626 = vmul.f32 %v1547, %v1547
      %v1627 = vmul.f32 %v1552, %v1552
      %v1628 = vmul.f32 %v1555, %v1555
      %v1629 = vmul.f32 %v1560, %v1560
      %v1630 = vmul.f32 %v1563, %v1563
      %v1631 = vmul.f32 %v1568, %v1568
      %v1632 = vmul.f32 %v1571, %v1571
      %v1633 = vmul.f32 %v1576, %v1576
      %v1634 = vmul.f32 %v1579, %v1579
      %v1635 = vadd.f32 %v1619, %v1620
      %v1636 = vadd.f32 %v1635, %v1621
      %v1637 = vadd.f32 %v1636, %v1622
      %v1638 = vadd.f32 %v1637, %v1623
      %v1639 = vadd.f32 %v1638, %v1624
      %v1640 = vadd.f32 %v1639, %v1625
      %v1641 = vadd.f32 %v1640, %v1626
      %v1642 = vadd.f32 %v1641, %v1627
      %v1643 = vadd.f32 %v1642, %v1628
      %v1644 = vadd.f32 %v1643, %v1629
      %v1645 = vadd.f32 %v1644, %v1630
      %v1646 = vadd.f32 %v1645, %v1631
      %v1647 = vadd.f32 %v1646, %v1632
      %v1648 = vadd.f32 %v1647, %v1633
      %v1649 = vadd.f32 %v1648, %v1634
      %v1650 = vrot.slane %v1649, 4
      %v1651 = vadd.f32 %v1649, %v1650
      %v1652 = vrot.slane %v1651, 2
      %v1653 = vadd.f32 %v1651, %v1652
      %v1654 = vrot.slane %v1653, 1
      %v1655 = vadd.f32 %v1653, %v1654
      %vm1656 = vcmask 1040384
      %v1657 = vsel %vm1656, %v1618, %v1655
      %vm1658 = vcmask 1041408
      %v1659 = vsel %vm1658, %v1657, 0.0
      %1660 = vst [vmem:[%s227] sm:$0xff] %v1659
      %p1661 = scmp.lt.s32.totalorder %s19, 1
      %s1662 = scalar_select %p1661, %s19, 1
      %p1663 = scmp.lt.s32.totalorder %s20, 1
      %s1664 = scalar_select %p1663, %s20, 1
      %s1665 = smul.addr %s1664, 16
      %s1666 = smul.addr %s1662, 32
      %s1667 = sadd.s32 %s1665, %s1666
      %s1668 = smul.addr %s1667, 8
      %s1669 = scalar_lea.vmem %s2, %s1668
      %p1670 = scmp.lt.s32.totalorder %s19, 1
      %s1671 = scalar_select %p1670, %s19, 1
      %p1672 = scmp.lt.s32.totalorder %s20, 1
      %s1673 = scalar_select %p1672, %s20, 1
      %s1674 = smul.addr %s1671, 2
      %s1675 = sadd.s32 %s1673, %s1674
      %s1676 = smul.addr %s1675, 8
      %s1677 = scalar_lea.vmem %s3, %s1676
      // Predicated region
      $region29: #{double_conv.4} parent=27 // pred_check
        %p1678 = pneg %p96
      $region30: #{double_conv.4} parent=27 // pred_check_branch
        %1680 = sbr.rel (%p1678) target = $region32
      $region31: #{double_conv.4} parent=27 // pred_region
        _
      $region32: #{double_conv.4} parent=27 // pred_fallthru
        _
      // Predicated region
      $region33: #{double_conv.4} parent=27 // pred_check
        %p1681 = pneg %p124
      $region34: #{double_conv.4} parent=27 // pred_check_branch
        %1683 = sbr.rel (%p1681) target = $region36
      $region35: #{double_conv.4} parent=27 // pred_region
        _
      $region36: #{double_conv.4} parent=27 // pred_fallthru
        _
    $region28: #{double_conv.4} parent=5 // pred_fallthru
      _
    %p1684 = scmp.le.s32.totalorder 2, %s10
    // Predicated region
    $region37: #{double_conv.4} parent=5 // pred_check
      %p1685 = pneg %p1684
    $region38: #{double_conv.4} parent=5 // pred_check_branch
      %1687 = sbr.rel (%p1685) target = $region40
    $region39: #{double_conv.4} parent=5 // pred_region
      %s1688 = ssub.s32 %s10, 2
      // Predicated region
      $region41: #{double_conv.4} parent=39 // pred_check
        %p1689 = pneg %p102
      $region42: #{double_conv.4} parent=39 // pred_check_branch
        %1691 = sbr.rel (%p1689) target = $region44
      $region43: #{double_conv.4} parent=39 // pred_region
        %p1692 = scmp.lt.s32.totalorder %s21, 1
        %s1693 = scalar_select %p1692, %s21, 1
        %p1694 = scmp.lt.s32.totalorder %s22, 1
        %s1695 = scalar_select %p1694, %s22, 1
        %s1696 = smul.addr %s1695, 16
        %s1697 = smul.addr %s1693, 32
        %s1698 = sadd.s32 %s1696, %s1697
        %s1699 = smul.addr %s1698, 8
        %s1700 = scalar_lea.vmem %s2, %s1699
      $region44: #{double_conv.4} parent=39 // pred_fallthru
        _
      // Predicated region
      $region45: #{double_conv.4} parent=39 // pred_check
        %p1701 = pneg %p130
      $region46: #{double_conv.4} parent=39 // pred_check_branch
        %1703 = sbr.rel (%p1701) target = $region48
      $region47: #{double_conv.4} parent=39 // pred_region
        %p1704 = scmp.lt.s32.totalorder %s21, 1
        %s1705 = scalar_select %p1704, %s21, 1
        %p1706 = scmp.lt.s32.totalorder %s22, 1
        %s1707 = scalar_select %p1706, %s22, 1
        %s1708 = smul.addr %s1705, 2
        %s1709 = sadd.s32 %s1707, %s1708
        %s1710 = smul.addr %s1709, 8
        %s1711 = scalar_lea.vmem %s3, %s1710
      $region48: #{double_conv.4} parent=39 // pred_fallthru
        _
    $region40: #{double_conv.4} parent=5 // pred_fallthru
      _
  $region6: #{double_conv.4} parent=0 // loop_footer
    %s14 = sadd.s32 1, %s10
  $region7: #{double_conv.4} parent=0 // loop_footer_branch
    %9 = sbr.rel target = $region3
  $region8: #{double_conv.4} parent=0 // loop_exit
    _

</llo_original>
